<compile_context>
chip_gen: v7x
topology: tpu7x:2x2x1
jax: 0.10.0
libtpu: 0.0.40
codegen_flags: <defaults>
</compile_context>

<pallas_src>
import functools

import jax
import jax.numpy as jnp
import numpy as np
from jax.experimental import pallas as pl
from jax.experimental.pallas import tpu as pltpu


@functools.lru_cache(maxsize=None)
def _pool_matrix(l_eff, kernel_size, stride):
    """(L_eff, L_out) averaging matrix for overlapping AvgPool1d windows (f32)."""
    l_out = (l_eff - kernel_size) // stride + 1
    p = np.zeros((l_eff, l_out), dtype=np.float32)
    for t in range(l_out):
        p[t * stride:t * stride + kernel_size, t] = 1.0 / kernel_size
    return p


def _pick_rows_per_block(n, row_bytes, target_bytes, min_steps=4, max_rows=16):
    """How many batch rows of x one grid step handles.

    Sized so one step moves ~target_bytes of in+out data (amortizes the ~0.35us
    per-step pipeline overhead), capped so that (a) the static unroll stays small and
    (b) there are >= min_steps grid steps when the batch allows it (>= 2 steps per
    TensorCore on v7x keeps the DMA/compute overlap alive).  No divisibility
    requirement on n: the caller uses grid = cdiv(n, tb) with a ragged final block.
    """
    cap = max(1, int(target_bytes) // max(int(row_bytes), 1))
    cap = min(cap, max_rows, n)
    if n > min_steps:
        cap = min(cap, -(-n // min_steps))          # ceil(n / min_steps)
    return max(1, cap)


def _make_kernel(tb, h, l_eff, l_out, kernel_size, stride):
    """Fused Conv1d(k=1) + ReLU + AvgPool1d kernel for one (tb, C_in, L) block."""
    k = kernel_size
    non_overlapping = (stride == kernel_size)

    def _body(x_ref, w_ref, b_ref, o_ref, pool_op):
        w = w_ref[...]                                             # (H, C_in), stationary
        b_bc = jnp.broadcast_to(b_ref[...], (h, l_eff))            # hoisted bias (#5)
        for n in range(tb):                                        # static unroll (#1)
            xn = x_ref[n, :, :l_eff]                               # (C_in, L_eff)
            y = jnp.dot(w, xn, preferred_element_type=jnp.float32)  # f32 MXU accumulate
            y = jnp.maximum(y + b_bc, 0.0)                         # bias + ReLU
            o_ref[n] = pool_op(y).astype(o_ref.dtype)              # (H, L_out)

    if non_overlapping:
        def kernel(x_ref, w_ref, b_ref, o_ref):
            # Non-overlapping windows: mean over groups of k adjacent columns (#2).
            pool_op = lambda y: y.reshape(h, l_out, k).mean(axis=-1)
            _body(x_ref, w_ref, b_ref, o_ref, pool_op)
    else:
        def kernel(x_ref, w_ref, b_ref, p_ref, o_ref):
            p = p_ref[...]                                         # (L_eff, L_out)
            pool_op = lambda y: jnp.dot(y.astype(p.dtype), p,
                                        preferred_element_type=jnp.float32)
            _body(x_ref, w_ref, b_ref, o_ref, pool_op)

    return kernel


def feat_avg_pool(x, weight, bias, kernel_size, stride, *, target_block_bytes=8 << 20):
    """Fused FeatAvgPool forward.

    x: (N, C_in, L), weight: (H, C_in, 1) Conv1d weight, bias: (H,).
    Returns (N, H, L_out) with L_out = (L - kernel_size) // stride + 1.
    """
    N, C_in, L = x.shape
    H = weight.shape[0]
    assert weight.shape[1] == C_in and weight.shape[2] == 1
    L_out = (L - kernel_size) // stride + 1
    assert L_out >= 1, "sequence too short for the pooling window"
    L_eff = (L_out - 1) * stride + kernel_size          # input columns actually consumed
    non_overlapping = (stride == kernel_size)

    # Conv1d(k=1) weight as a plain (H, C_in) matrix, in x.dtype (#12).  The bias is
    # added to the f32 accumulator, so it stays f32 (free and exact).
    w = weight.reshape(H, C_in).astype(x.dtype)
    b = bias.reshape(H, 1).astype(jnp.float32)

    itemsize = jnp.dtype(x.dtype).itemsize
    row_bytes = (C_in * L + H * L_out) * itemsize
    tb = _pick_rows_per_block(N, row_bytes, target_block_bytes)
    grid = pl.cdiv(N, tb)                                # ragged final block is OK (#6)

    kernel = _make_kernel(tb, H, L_eff, L_out, kernel_size, stride)

    in_specs = [
        pl.BlockSpec((tb, C_in, L), lambda i: (i, 0, 0)),
        pl.BlockSpec((H, C_in), lambda i: (0, 0)),       # constant block -> VMEM resident
        pl.BlockSpec((H, 1), lambda i: (0, 0)),
    ]
    operands = [x, w, b]
    const_bytes = H * C_in * jnp.dtype(w.dtype).itemsize + H * 4

    if not non_overlapping:
        # Overlapping windows: banded averaging matrix, carried in x.dtype so bf16
        # inputs use the fast bf16 MXU path (#4); accumulation stays f32.
        p_dtype = x.dtype if x.dtype == jnp.bfloat16 else jnp.float32
        pool = jnp.asarray(_pool_matrix(L_eff, kernel_size, stride), dtype=p_dtype)
        in_specs.append(pl.BlockSpec((L_eff, L_out), lambda i: (0, 0)))
        operands.append(pool)
        const_bytes += L_eff * L_out * jnp.dtype(p_dtype).itemsize

    out_specs = pl.BlockSpec((tb, H, L_out), lambda i: (i, 0, 0))

    # Double-buffered blocks + resident constants + f32 intermediates.  Only override
    # the scoped-VMEM limit when the smallest default (16 MiB on v5e) could be too
    # small; cap well under v7x's 64 MiB physical VMEM (#7/#9).
    est_vmem = (2 * (tb * C_in * L + tb * H * L_out) * itemsize
                + 2 * const_bytes
                + 4 * (H * L_eff + tb * H * L_out) * 4)
    vmem_limit = None if est_vmem <= (14 << 20) else min(est_vmem + (8 << 20), 48 << 20)

    return pl.pallas_call(
        kernel,
        out_shape=jax.ShapeDtypeStruct((N, H, L_out), x.dtype),
        grid_spec=pltpu.PrefetchScalarGridSpec(
            num_scalar_prefetch=0,
            grid=(grid,),
            in_specs=in_specs,
            out_specs=out_specs,
        ),
        compiler_params=pltpu.CompilerParams(
            dimension_semantics=("parallel",),
            vmem_limit_bytes=vmem_limit),
    )(*operands)                                         # (N, H, L_out), PyTorch layout


def _reference(x, weight, bias, kernel_size, stride):
    """Pure-JAX reference matching PyTorch semantics (computed in f32)."""
    N, C_in, L = x.shape
    H = weight.shape[0]
    L_out = (L - kernel_size) // stride + 1
    w = weight.reshape(H, C_in).astype(jnp.float32)
    y = jnp.einsum("hc,ncl->nhl", w, x.astype(jnp.float32))
    y = y + bias.astype(jnp.float32)[None, :, None]
    y = jnp.maximum(y, 0.0)
    cols = [y[:, :, t * stride:t * stride + kernel_size].mean(axis=-1)
            for t in range(L_out)]
    return jnp.stack(cols, axis=-1)                      # (N, H, L_out)


if __name__ == "__main__":
    key = jax.random.PRNGKey(0)
    kx, kw, kb = jax.random.split(key, 3)

    def _run_and_check(x, weight, bias, k, s, rtol, atol):
        out = jax.block_until_ready(feat_avg_pool(x, weight, bias, k, s))
        ref = _reference(x, weight, bias, k, s)
        assert out.shape == ref.shape
        np.testing.assert_allclose(np.asarray(out, dtype=np.float32),
                                   np.asarray(ref, dtype=np.float32),
                                   rtol=rtol, atol=atol)
        return out

    # Small shapes consistent with the module: batch=2, channels=4, seq=16, hidden=32.
    N, C_in, L, H = 2, 4, 16, 32
    x = jax.random.normal(kx, (N, C_in, L), dtype=jnp.float32)
    weight = jax.random.normal(kw, (H, C_in, 1), dtype=jnp.float32) * 0.1  # Conv1d weight
    bias = jax.random.normal(kb, (H,), dtype=jnp.float32) * 0.1            # Conv1d bias

    # 1) Main demo: non-overlapping pooling (kernel_size == stride == 2).
    _run_and_check(x, weight, bias, 2, 2, 1e-4, 1e-5)

    # 2) Overlapping pooling fallback (kernel_size=3, stride=1 -> pool-matrix path).
    _run_and_check(x, weight, bias, 3, 1, 1e-4, 1e-5)

    # 3) Ragged batch (N=5 not divisible by the 2-row block) and dropped input tail
    #    (L=20 with kernel_size=stride=3): exercises the cdiv grid + boundary block.
    x5 = jax.random.normal(kx, (5, C_in, 20), dtype=jnp.float32)
    _run_and_check(x5, weight, bias, 3, 3, 1e-4, 1e-5)

    # 4) bf16 inputs: native bf16 MXU path with f32 accumulation.
    _run_and_check(x.astype(jnp.bfloat16), weight.astype(jnp.bfloat16),
                   bias.astype(jnp.bfloat16), 2, 2, 2e-2, 2e-2)

    print("KERNEL_OK")
</pallas_src>

<mosaic_0001>
module attributes {stable_mosaic.version = 11 : i64} {
  func.func @kernel(%arg0: i32, %arg1: memref<2x4x16xf32, #tpu.memory_space<vmem>>, %arg2: memref<32x4xf32, #tpu.memory_space<vmem>>, %arg3: memref<32x1xf32, #tpu.memory_space<vmem>>, %arg4: memref<2x32x8xf32, #tpu.memory_space<vmem>>) attributes {dimension_semantics = [#tpu.dimension_semantics<parallel>], iteration_bounds = array<i64: 1>, scalar_prefetch = 0 : i64, scratch_operands = 0 : i64, tpu.core_type = #tpu.core_type<tc>, window_params = [{transform_indices = @transform_0, window_bounds = array<i64: 2, 4, 16>}, {pipeline_mode = #tpu.pipeline_mode<synchronous>, transform_indices = @transform_1, window_bounds = array<i64: 32, 4>}, {pipeline_mode = #tpu.pipeline_mode<synchronous>, transform_indices = @transform_2, window_bounds = array<i64: 32, 1>}, {transform_indices = @transform_3, window_bounds = array<i64: 2, 32, 8>}]} {
    %c0 = arith.constant 0 : index
    %c0_0 = arith.constant 0 : index
    %0 = vector.load %arg2[%c0, %c0_0] : memref<32x4xf32, #tpu.memory_space<vmem>>, vector<32x4xf32>
    %c0_1 = arith.constant 0 : index
    %c0_2 = arith.constant 0 : index
    %1 = vector.load %arg3[%c0_1, %c0_2] : memref<32x1xf32, #tpu.memory_space<vmem>>, vector<32x1xf32>
    %2 = vector.shape_cast %1 : vector<32x1xf32> to vector<32x1xf32>
    %3 = vector.broadcast %2 : vector<32x1xf32> to vector<32x16xf32>
    %c0_3 = arith.constant 0 : index
    %c0_4 = arith.constant 0 : index
    %c0_5 = arith.constant 0 : index
    %4 = vector.load %arg1[%c0_3, %c0_4, %c0_5] : memref<2x4x16xf32, #tpu.memory_space<vmem>>, vector<1x4x16xf32>
    %5 = vector.shape_cast %4 : vector<1x4x16xf32> to vector<4x16xf32>
    %cst = arith.constant dense<0.000000e+00> : vector<32x16xf32>
    %6 = tpu.matmul %0, %5, %cst {dimension_numbers = #tpu.dot_dimension_numbers<[1], [0], [0], [1], [0, 0, 1, 1], [], []>} : vector<32x4xf32>, vector<4x16xf32>, vector<32x16xf32> -> vector<32x16xf32>
    %7 = arith.addf %6, %3 : vector<32x16xf32>
    %cst_6 = arith.constant 0.000000e+00 : f32
    %8 = vector.broadcast %cst_6 : f32 to vector<32x16xf32>
    %9 = arith.maximumf %7, %8 : vector<32x16xf32>
    %10 = vector.shape_cast %9 : vector<32x16xf32> to vector<32x8x2xf32>
    %cst_7 = arith.constant dense<0.000000e+00> : vector<32x8xf32>
    %11 = vector.multi_reduction <add>, %10, %cst_7 [2] : vector<32x8x2xf32> to vector<32x8xf32>
    %cst_8 = arith.constant 2.000000e+00 : f32
    %12 = vector.broadcast %cst_8 : f32 to vector<32x8xf32>
    %13 = arith.divf %11, %12 : vector<32x8xf32>
    %c0_9 = arith.constant 0 : index
    %c0_10 = arith.constant 0 : index
    %c0_11 = arith.constant 0 : index
    %14 = vector.load %arg4[%c0_9, %c0_10, %c0_11] : memref<2x32x8xf32, #tpu.memory_space<vmem>>, vector<1x32x8xf32>
    %15 = vector.shape_cast %14 : vector<1x32x8xf32> to vector<32x8xf32>
    %16 = vector.shape_cast %13 : vector<32x8xf32> to vector<1x32x8xf32>
    tpu.vector_store %arg4[%c0_9, %c0_10, %c0_11], %16 {strides = array<i32>} : memref<2x32x8xf32, #tpu.memory_space<vmem>>, vector<1x32x8xf32>,
    %c1 = arith.constant 1 : index
    %c0_12 = arith.constant 0 : index
    %c0_13 = arith.constant 0 : index
    %17 = vector.load %arg1[%c1, %c0_12, %c0_13] : memref<2x4x16xf32, #tpu.memory_space<vmem>>, vector<1x4x16xf32>
    %18 = vector.shape_cast %17 : vector<1x4x16xf32> to vector<4x16xf32>
    %cst_14 = arith.constant dense<0.000000e+00> : vector<32x16xf32>
    %19 = tpu.matmul %0, %18, %cst_14 {dimension_numbers = #tpu.dot_dimension_numbers<[1], [0], [0], [1], [0, 0, 1, 1], [], []>} : vector<32x4xf32>, vector<4x16xf32>, vector<32x16xf32> -> vector<32x16xf32>
    %20 = arith.addf %19, %3 : vector<32x16xf32>
    %cst_15 = arith.constant 0.000000e+00 : f32
    %21 = vector.broadcast %cst_15 : f32 to vector<32x16xf32>
    %22 = arith.maximumf %20, %21 : vector<32x16xf32>
    %23 = vector.shape_cast %22 : vector<32x16xf32> to vector<32x8x2xf32>
    %cst_16 = arith.constant dense<0.000000e+00> : vector<32x8xf32>
    %24 = vector.multi_reduction <add>, %23, %cst_16 [2] : vector<32x8x2xf32> to vector<32x8xf32>
    %cst_17 = arith.constant 2.000000e+00 : f32
    %25 = vector.broadcast %cst_17 : f32 to vector<32x8xf32>
    %26 = arith.divf %24, %25 : vector<32x8xf32>
    %c1_18 = arith.constant 1 : index
    %c0_19 = arith.constant 0 : index
    %c0_20 = arith.constant 0 : index
    %27 = vector.load %arg4[%c1_18, %c0_19, %c0_20] : memref<2x32x8xf32, #tpu.memory_space<vmem>>, vector<1x32x8xf32>
    %28 = vector.shape_cast %27 : vector<1x32x8xf32> to vector<32x8xf32>
    %29 = vector.shape_cast %26 : vector<32x8xf32> to vector<1x32x8xf32>
    tpu.vector_store %arg4[%c1_18, %c0_19, %c0_20], %29 {strides = array<i32>} : memref<2x32x8xf32, #tpu.memory_space<vmem>>, vector<1x32x8xf32>,
    return
  }
  func.func @transform_0(%arg0: i32) -> (i32, i32, i32) {
    %c0_i32 = arith.constant 0 : i32
    %c0_i32_0 = arith.constant 0 : i32
    %c0_i32_1 = arith.constant 0 : i32
    return %arg0, %c0_i32, %c0_i32_0 : i32, i32, i32
  }
  func.func @transform_1(%arg0: i32) -> (i32, i32) {
    %c0_i32 = arith.constant 0 : i32
    %c0_i32_0 = arith.constant 0 : i32
    %c0_i32_1 = arith.constant 0 : i32
    return %c0_i32, %c0_i32_0 : i32, i32
  }
  func.func @transform_2(%arg0: i32) -> (i32, i32) {
    %c0_i32 = arith.constant 0 : i32
    %c0_i32_0 = arith.constant 0 : i32
    %c0_i32_1 = arith.constant 0 : i32
    return %c0_i32, %c0_i32_0 : i32, i32
  }
  func.func @transform_3(%arg0: i32) -> (i32, i32, i32) {
    %c0_i32 = arith.constant 0 : i32
    %c0_i32_0 = arith.constant 0 : i32
    %c0_i32_1 = arith.constant 0 : i32
    return %arg0, %c0_i32, %c0_i32_0 : i32, i32, i32
  }
}

</mosaic_0001>

<llo_original>
// kernel: tpu_custom_call.1
$region0: #{tpu_custom_call.1}
  #allocation0 [shape = 'u32[]', space=smem, size = 0x4, offset = 0x4, fixed_abs, tag = 'smem constant byte address 0x4 - core index']
  #allocation1 [shape = 'u32[144,128]{1,0:T(1,128)}', space=vmem, size = 0x12000, scoped, tag = 'internal scratch']
  %s0 = inlined_call_operand.vmem [shape: f32[2,4,16], index: 0, kind: input, shape index: {}]
  %s1 = inlined_call_operand.vmem [shape: f32[32,4], index: 1, kind: input, shape index: {}]
  %s2 = inlined_call_operand.vmem [shape: f32[32,1], index: 2, kind: input, shape index: {}]
  %s3 = inlined_call_operand.vmem [shape: f32[2,32,8], index: 3, kind: output, shape index: {}]
  %s4 = sld [smem:[#allocation0]]
  $region22: #{tpu_custom_call.1} parent=0
    _
  %s6 = ssub.s32 1, %s4
  %s7 = scalar_select 0, %s6, %s4
  // Predicated region
  $region2: #{tpu_custom_call.1} parent=0 // pred_check
    _
  $region3: #{tpu_custom_call.1} parent=0 // pred_check_branch
    %9 = sbr.rel (0) target = $region5
  $region4: #{tpu_custom_call.1} parent=0 // pred_region
    _
  $region5: #{tpu_custom_call.1} parent=0 // pred_fallthru
    _
  // Predicated region
  $region6: #{tpu_custom_call.1} parent=0 // pred_check
    _
  $region7: #{tpu_custom_call.1} parent=0 // pred_check_branch
    %11 = sbr.rel (0) target = $region9
  $region8: #{tpu_custom_call.1} parent=0 // pred_region
    _
  $region9: #{tpu_custom_call.1} parent=0 // pred_fallthru
    _
  // Predicated region
  $region10: #{tpu_custom_call.1} parent=0 // pred_check
    _
  $region11: #{tpu_custom_call.1} parent=0 // pred_check_branch
    %13 = sbr.rel (0) target = $region13
  $region12: #{tpu_custom_call.1} parent=0 // pred_region
    _
  $region13: #{tpu_custom_call.1} parent=0 // pred_fallthru
    _
  %v14 = vld [vmem:[%s1] sm:$0xff]
  %v15 = vld [vmem:[%s1 + $0x8] sm:$0xff]
  %v16 = vld [vmem:[%s1 + $0x10] sm:$0xff]
  %v17 = vld [vmem:[%s1 + $0x18] sm:$0xff]
  %v18 = vld [vmem:[%s2] sm:$0xff]
  %v19 = vld [vmem:[%s2 + $0x8] sm:$0xff]
  %v20 = vld [vmem:[%s2 + $0x10] sm:$0xff]
  %v21 = vld [vmem:[%s2 + $0x18] sm:$0xff]
  %23 = vset.pattern.permute.xlu0 0
  %24 = vperm.xlu0 %23, %v18
  %v25 = vpop.permute.xlu0 %24
  %28 = vset.pattern.permute.xlu0 0
  %29 = vperm.xlu0 %28, %v19
  %v30 = vpop.permute.xlu0 %29
  %33 = vset.pattern.permute.xlu0 0
  %34 = vperm.xlu0 %33, %v20
  %v35 = vpop.permute.xlu0 %34
  %38 = vset.pattern.permute.xlu0 0
  %39 = vperm.xlu0 %38, %v21
  %v40 = vpop.permute.xlu0 %39
  %v42 = vld [vmem:[%s0] sm:$0xf]
  %vm43 = vcmask 31744
  %v45 = vsel %vm43, %v14, 0
  %v48 = vsel %vm43, %v15, 0
  %v51 = vsel %vm43, %v16, 0
  %v54 = vsel %vm43, %v17, 0
  %vm56 = vcmask 1043456
  %v58 = vsel %vm56, %v42, 0
  %60 = vmatprep.subr.mxu0 0.0
  %61 = vmatpush1.msra.mxu0 %v58
  %62 = vmatprep.subr.mxu0 0.0
  %63 = vmatpush1.msra.mxu0 0.0
  %64 = vmatprep.subr.mxu0 0.0
  %65 = vmatpush1.msra.mxu0 0.0
  %66 = vmatprep.subr.mxu0 0.0
  %67 = vmatpush1.msra.mxu0 0.0
  %68 = vmatprep.subr.mxu0 0.0
  %69 = vmatpush1.msra.mxu0 0.0
  %70 = vmatprep.subr.mxu0 0.0
  %71 = vmatpush1.msra.mxu0 0.0
  %72 = vmatprep.subr.mxu0 0.0
  %73 = vmatpush1.msra.mxu0 0.0
  %74 = vmatprep.subr.mxu0 0.0
  %75 = vmatpush1.msra.mxu0 0.0
  %76 = vmatprep.subr.mxu0 0.0
  %77 = vmatpush1.msra.mxu0 0.0
  %78 = vmatprep.subr.mxu0 0.0
  %79 = vmatpush1.msra.mxu0 0.0
  %80 = vmatprep.subr.mxu0 0.0
  %81 = vmatpush1.msra.mxu0 0.0
  %82 = vmatprep.subr.mxu0 0.0
  %83 = vmatpush1.msra.mxu0 0.0
  %84 = vmatprep.subr.mxu0 0.0
  %85 = vmatpush1.msra.mxu0 0.0
  %86 = vmatprep.subr.mxu0 0.0
  %87 = vmatpush1.msra.mxu0 0.0
  %88 = vmatprep.subr.mxu0 0.0
  %89 = vmatpush1.msra.mxu0 0.0
  %90 = vmatprep.subr.mxu0 0.0
  %91 = vmatpush1.msra.mxu0 0.0
  %92 = vmatprep.subr.mxu0 0.0
  %93 = vmatpush1.msra.mxu0 0.0
  %94 = vmatprep.subr.mxu0 0.0
  %95 = vmatpush1.msra.mxu0 0.0
  %96 = vmatprep.subr.mxu0 0.0
  %97 = vmatpush1.msra.mxu0 0.0
  %98 = vmatprep.subr.mxu0 0.0
  %99 = vmatpush1.msra.mxu0 0.0
  %100 = vmatprep.subr.mxu0 0.0
  %101 = vmatpush1.msra.mxu0 0.0
  %102 = vmatprep.subr.mxu0 0.0
  %103 = vmatpush1.msra.mxu0 0.0
  %104 = vmatprep.subr.mxu0 0.0
  %105 = vmatpush1.msra.mxu0 0.0
  %106 = vmatprep.subr.mxu0 0.0
  %107 = vmatpush1.msra.mxu0 0.0
  %108 = vmatprep.subr.mxu0 0.0
  %109 = vmatpush1.msra.mxu0 0.0
  %110 = vmatprep.subr.mxu0 0.0
  %111 = vmatpush1.msra.mxu0 0.0
  %112 = vmatprep.subr.mxu0 0.0
  %113 = vmatpush1.msra.mxu0 0.0
  %114 = vmatprep.subr.mxu0 0.0
  %115 = vmatpush1.msra.mxu0 0.0
  %116 = vmatprep.subr.mxu0 0.0
  %117 = vmatpush1.msra.mxu0 0.0
  %118 = vmatprep.subr.mxu0 0.0
  %119 = vmatpush1.msra.mxu0 0.0
  %120 = vmatprep.subr.mxu0 0.0
  %121 = vmatpush1.msra.mxu0 0.0
  %122 = vmatprep.subr.mxu0 0.0
  %123 = vmatpush1.msra.mxu0 0.0
  %124 = vmatprep.mubr.f32.mxu0 0.0
  %125 = vmatmul.mubr.f32.gmra.mrb[0].mxu0 %v45
  %v126 = vpop.f32.mrb[0].mxu0
  %v127 = vadd.f32 %v25, %v126
  %v128 = vpop.f32.mrb[0].mxu0
  %129 = vmatprep.mubr.f32.mxu0 0.0
  %130 = vmatmul.mubr.f32.gmra.mrb[0].mxu0 %v48
  %v131 = vpop.f32.mrb[0].mxu0
  %v132 = vadd.f32 %v30, %v131
  %v133 = vpop.f32.mrb[0].mxu0
  %134 = vmatprep.mubr.f32.mxu0 0.0
  %135 = vmatmul.mubr.f32.gmra.mrb[0].mxu0 %v51
  %v136 = vpop.f32.mrb[0].mxu0
  %v137 = vadd.f32 %v35, %v136
  %v138 = vpop.f32.mrb[0].mxu0
  %139 = vmatprep.mubr.f32.mxu0 0.0
  %140 = vmatmul.mubr.f32.gmra.mrb[0].mxu0 %v54
  %v141 = vpop.f32.mrb[0].mxu0
  %v142 = vadd.f32 %v40, %v141
  %v143 = vpop.f32.mrb[0].mxu0
  %144 = vdwg.mxu0
  %v145 = vmax.f32 %v127, 0.0
  %v146 = vmax.f32 %v132, 0.0
  %v147 = vmax.f32 %v137, 0.0
  %v148 = vmax.f32 %v142, 0.0
  %153 = vrot.lane.b32.xlu0 %v145, 126
  %v154 = vpop.permute.xlu0 %153
  %155 = vrot.lane.b32.xlu0 %v146, 126
  %v156 = vpop.permute.xlu0 %155
  %157 = vrot.lane.b32.xlu0 %v147, 126
  %v158 = vpop.permute.xlu0 %157
  %159 = vrot.lane.b32.xlu0 %v148, 126
  %v160 = vpop.permute.xlu0 %159
  %165 = vrot.lane.b32.xlu0 %v145, 124
  %v166 = vpop.permute.xlu0 %165
  %167 = vrot.lane.b32.xlu0 %v146, 124
  %v168 = vpop.permute.xlu0 %167
  %169 = vrot.lane.b32.xlu0 %v147, 124
  %v170 = vpop.permute.xlu0 %169
  %171 = vrot.lane.b32.xlu0 %v148, 124
  %v172 = vpop.permute.xlu0 %171
  %177 = vrot.lane.b32.xlu0 %v145, 122
  %v178 = vpop.permute.xlu0 %177
  %179 = vrot.lane.b32.xlu0 %v146, 122
  %v180 = vpop.permute.xlu0 %179
  %181 = vrot.lane.b32.xlu0 %v147, 122
  %v182 = vpop.permute.xlu0 %181
  %183 = vrot.lane.b32.xlu0 %v148, 122
  %v184 = vpop.permute.xlu0 %183
  %189 = vrot.lane.b32.xlu0 %v145, 120
  %v190 = vpop.permute.xlu0 %189
  %191 = vrot.lane.b32.xlu0 %v146, 120
  %v192 = vpop.permute.xlu0 %191
  %193 = vrot.lane.b32.xlu0 %v147, 120
  %v194 = vpop.permute.xlu0 %193
  %195 = vrot.lane.b32.xlu0 %v148, 120
  %v196 = vpop.permute.xlu0 %195
  %201 = vrot.lane.b32.xlu0 %v145, 118
  %v202 = vpop.permute.xlu0 %201
  %203 = vrot.lane.b32.xlu0 %v146, 118
  %v204 = vpop.permute.xlu0 %203
  %205 = vrot.lane.b32.xlu0 %v147, 118
  %v206 = vpop.permute.xlu0 %205
  %207 = vrot.lane.b32.xlu0 %v148, 118
  %v208 = vpop.permute.xlu0 %207
  %213 = vrot.lane.b32.xlu0 %v145, 116
  %v214 = vpop.permute.xlu0 %213
  %215 = vrot.lane.b32.xlu0 %v146, 116
  %v216 = vpop.permute.xlu0 %215
  %217 = vrot.lane.b32.xlu0 %v147, 116
  %v218 = vpop.permute.xlu0 %217
  %219 = vrot.lane.b32.xlu0 %v148, 116
  %v220 = vpop.permute.xlu0 %219
  %225 = vrot.lane.b32.xlu0 %v145, 114
  %v226 = vpop.permute.xlu0 %225
  %227 = vrot.lane.b32.xlu0 %v146, 114
  %v228 = vpop.permute.xlu0 %227
  %229 = vrot.lane.b32.xlu0 %v147, 114
  %v230 = vpop.permute.xlu0 %229
  %231 = vrot.lane.b32.xlu0 %v148, 114
  %v232 = vpop.permute.xlu0 %231
  %v237 = vcombine.low %v145, %v166
  %v238 = vcombine.high %v145, %v166
  %v240 = vunpack.c.l.s4 1983009808
  %v241 = vunpack.c.0.s8 %v240
  %v242 = vlaneseq
  %v243 = vshrl.u32 %v242, 7
  %v244 = vsub.s32 %v241, %v243
  %v245 = vrot.slane %v237, %v244
  %v247 = vunpack.c.l.s4 1983009808
  %v248 = vunpack.c.0.s8 %v247
  %v249 = vlaneseq
  %v250 = vshrl.u32 %v249, 7
  %v251 = vsub.s32 %v248, %v250
  %v252 = vrot.slane %v238, %v251
  %v253 = vcombine.low %v154, %v178
  %v254 = vcombine.high %v154, %v178
  %v256 = vunpack.c.l.s4 1983009808
  %v257 = vunpack.c.0.s8 %v256
  %v258 = vlaneseq
  %v259 = vshrl.u32 %v258, 7
  %v260 = vsub.s32 %v257, %v259
  %v261 = vrot.slane %v253, %v260
  %v263 = vunpack.c.l.s4 1983009808
  %v264 = vunpack.c.0.s8 %v263
  %v265 = vlaneseq
  %v266 = vshrl.u32 %v265, 7
  %v267 = vsub.s32 %v264, %v266
  %v268 = vrot.slane %v254, %v267
  %v269 = vcombine.low %v190, %v214
  %v270 = vcombine.high %v190, %v214
  %v272 = vunpack.c.l.s4 1983009808
  %v273 = vunpack.c.0.s8 %v272
  %v274 = vlaneseq
  %v275 = vshrl.u32 %v274, 7
  %v276 = vsub.s32 %v273, %v275
  %v277 = vrot.slane %v269, %v276
  %v279 = vunpack.c.l.s4 1983009808
  %v280 = vunpack.c.0.s8 %v279
  %v281 = vlaneseq
  %v282 = vshrl.u32 %v281, 7
  %v283 = vsub.s32 %v280, %v282
  %v284 = vrot.slane %v270, %v283
  %v285 = vcombine.low %v202, %v226
  %v286 = vcombine.high %v202, %v226
  %v288 = vunpack.c.l.s4 1983009808
  %v289 = vunpack.c.0.s8 %v288
  %v290 = vlaneseq
  %v291 = vshrl.u32 %v290, 7
  %v292 = vsub.s32 %v289, %v291
  %v293 = vrot.slane %v285, %v292
  %v295 = vunpack.c.l.s4 1983009808
  %v296 = vunpack.c.0.s8 %v295
  %v297 = vlaneseq
  %v298 = vshrl.u32 %v297, 7
  %v299 = vsub.s32 %v296, %v298
  %v300 = vrot.slane %v286, %v299
  %v301 = vcombine.low %v245, %v261
  %v302 = vcombine.high %v245, %v261
  %v304 = vunpack.c.l.s4 1934713408
  %v305 = vunpack.c.0.s8 %v304
  %v306 = vlaneseq
  %v307 = vshrl.u32 %v306, 7
  %v308 = vsub.s32 %v305, %v307
  %v309 = vrot.slane %v301, %v308
  %v311 = vunpack.c.l.s4 1934713408
  %v312 = vunpack.c.0.s8 %v311
  %v313 = vlaneseq
  %v314 = vshrl.u32 %v313, 7
  %v315 = vsub.s32 %v312, %v314
  %v316 = vrot.slane %v302, %v315
  %v317 = vcombine.low %v252, %v268
  %v318 = vcombine.high %v252, %v268
  %v320 = vunpack.c.l.s4 1934713408
  %v321 = vunpack.c.0.s8 %v320
  %v322 = vlaneseq
  %v323 = vshrl.u32 %v322, 7
  %v324 = vsub.s32 %v321, %v323
  %v325 = vrot.slane %v317, %v324
  %v327 = vunpack.c.l.s4 1934713408
  %v328 = vunpack.c.0.s8 %v327
  %v329 = vlaneseq
  %v330 = vshrl.u32 %v329, 7
  %v331 = vsub.s32 %v328, %v330
  %v332 = vrot.slane %v318, %v331
  %v333 = vcombine.low %v277, %v293
  %v334 = vcombine.high %v277, %v293
  %v336 = vunpack.c.l.s4 1934713408
  %v337 = vunpack.c.0.s8 %v336
  %v338 = vlaneseq
  %v339 = vshrl.u32 %v338, 7
  %v340 = vsub.s32 %v337, %v339
  %v341 = vrot.slane %v333, %v340
  %v343 = vunpack.c.l.s4 1934713408
  %v344 = vunpack.c.0.s8 %v343
  %v345 = vlaneseq
  %v346 = vshrl.u32 %v345, 7
  %v347 = vsub.s32 %v344, %v346
  %v348 = vrot.slane %v334, %v347
  %v349 = vcombine.low %v284, %v300
  %v350 = vcombine.high %v284, %v300
  %v352 = vunpack.c.l.s4 1934713408
  %v353 = vunpack.c.0.s8 %v352
  %v354 = vlaneseq
  %v355 = vshrl.u32 %v354, 7
  %v356 = vsub.s32 %v353, %v355
  %v357 = vrot.slane %v349, %v356
  %v359 = vunpack.c.l.s4 1934713408
  %v360 = vunpack.c.0.s8 %v359
  %v361 = vlaneseq
  %v362 = vshrl.u32 %v361, 7
  %v363 = vsub.s32 %v360, %v362
  %v364 = vrot.slane %v350, %v363
  %v365 = vcombine.low %v309, %v341
  %v366 = vcombine.high %v309, %v341
  %v367 = vcombine.low %v316, %v348
  %v368 = vcombine.high %v316, %v348
  %v369 = vcombine.low %v325, %v357
  %v370 = vcombine.high %v325, %v357
  %v371 = vcombine.low %v332, %v364
  %v372 = vcombine.high %v332, %v364
  %v373 = vcombine.low %v146, %v168
  %v374 = vcombine.high %v146, %v168
  %v376 = vunpack.c.l.s4 1983009808
  %v377 = vunpack.c.0.s8 %v376
  %v378 = vlaneseq
  %v379 = vshrl.u32 %v378, 7
  %v380 = vsub.s32 %v377, %v379
  %v381 = vrot.slane %v373, %v380
  %v383 = vunpack.c.l.s4 1983009808
  %v384 = vunpack.c.0.s8 %v383
  %v385 = vlaneseq
  %v386 = vshrl.u32 %v385, 7
  %v387 = vsub.s32 %v384, %v386
  %v388 = vrot.slane %v374, %v387
  %v389 = vcombine.low %v156, %v180
  %v390 = vcombine.high %v156, %v180
  %v392 = vunpack.c.l.s4 1983009808
  %v393 = vunpack.c.0.s8 %v392
  %v394 = vlaneseq
  %v395 = vshrl.u32 %v394, 7
  %v396 = vsub.s32 %v393, %v395
  %v397 = vrot.slane %v389, %v396
  %v399 = vunpack.c.l.s4 1983009808
  %v400 = vunpack.c.0.s8 %v399
  %v401 = vlaneseq
  %v402 = vshrl.u32 %v401, 7
  %v403 = vsub.s32 %v400, %v402
  %v404 = vrot.slane %v390, %v403
  %v405 = vcombine.low %v192, %v216
  %v406 = vcombine.high %v192, %v216
  %v408 = vunpack.c.l.s4 1983009808
  %v409 = vunpack.c.0.s8 %v408
  %v410 = vlaneseq
  %v411 = vshrl.u32 %v410, 7
  %v412 = vsub.s32 %v409, %v411
  %v413 = vrot.slane %v405, %v412
  %v415 = vunpack.c.l.s4 1983009808
  %v416 = vunpack.c.0.s8 %v415
  %v417 = vlaneseq
  %v418 = vshrl.u32 %v417, 7
  %v419 = vsub.s32 %v416, %v418
  %v420 = vrot.slane %v406, %v419
  %v421 = vcombine.low %v204, %v228
  %v422 = vcombine.high %v204, %v228
  %v424 = vunpack.c.l.s4 1983009808
  %v425 = vunpack.c.0.s8 %v424
  %v426 = vlaneseq
  %v427 = vshrl.u32 %v426, 7
  %v428 = vsub.s32 %v425, %v427
  %v429 = vrot.slane %v421, %v428
  %v431 = vunpack.c.l.s4 1983009808
  %v432 = vunpack.c.0.s8 %v431
  %v433 = vlaneseq
  %v434 = vshrl.u32 %v433, 7
  %v435 = vsub.s32 %v432, %v434
  %v436 = vrot.slane %v422, %v435
  %v437 = vcombine.low %v381, %v397
  %v438 = vcombine.high %v381, %v397
  %v440 = vunpack.c.l.s4 1934713408
  %v441 = vunpack.c.0.s8 %v440
  %v442 = vlaneseq
  %v443 = vshrl.u32 %v442, 7
  %v444 = vsub.s32 %v441, %v443
  %v445 = vrot.slane %v437, %v444
  %v447 = vunpack.c.l.s4 1934713408
  %v448 = vunpack.c.0.s8 %v447
  %v449 = vlaneseq
  %v450 = vshrl.u32 %v449, 7
  %v451 = vsub.s32 %v448, %v450
  %v452 = vrot.slane %v438, %v451
  %v453 = vcombine.low %v388, %v404
  %v454 = vcombine.high %v388, %v404
  %v456 = vunpack.c.l.s4 1934713408
  %v457 = vunpack.c.0.s8 %v456
  %v458 = vlaneseq
  %v459 = vshrl.u32 %v458, 7
  %v460 = vsub.s32 %v457, %v459
  %v461 = vrot.slane %v453, %v460
  %v463 = vunpack.c.l.s4 1934713408
  %v464 = vunpack.c.0.s8 %v463
  %v465 = vlaneseq
  %v466 = vshrl.u32 %v465, 7
  %v467 = vsub.s32 %v464, %v466
  %v468 = vrot.slane %v454, %v467
  %v469 = vcombine.low %v413, %v429
  %v470 = vcombine.high %v413, %v429
  %v472 = vunpack.c.l.s4 1934713408
  %v473 = vunpack.c.0.s8 %v472
  %v474 = vlaneseq
  %v475 = vshrl.u32 %v474, 7
  %v476 = vsub.s32 %v473, %v475
  %v477 = vrot.slane %v469, %v476
  %v479 = vunpack.c.l.s4 1934713408
  %v480 = vunpack.c.0.s8 %v479
  %v481 = vlaneseq
  %v482 = vshrl.u32 %v481, 7
  %v483 = vsub.s32 %v480, %v482
  %v484 = vrot.slane %v470, %v483
  %v485 = vcombine.low %v420, %v436
  %v486 = vcombine.high %v420, %v436
  %v488 = vunpack.c.l.s4 1934713408
  %v489 = vunpack.c.0.s8 %v488
  %v490 = vlaneseq
  %v491 = vshrl.u32 %v490, 7
  %v492 = vsub.s32 %v489, %v491
  %v493 = vrot.slane %v485, %v492
  %v495 = vunpack.c.l.s4 1934713408
  %v496 = vunpack.c.0.s8 %v495
  %v497 = vlaneseq
  %v498 = vshrl.u32 %v497, 7
  %v499 = vsub.s32 %v496, %v498
  %v500 = vrot.slane %v486, %v499
  %v501 = vcombine.low %v445, %v477
  %v502 = vcombine.high %v445, %v477
  %v503 = vcombine.low %v452, %v484
  %v504 = vcombine.high %v452, %v484
  %v505 = vcombine.low %v461, %v493
  %v506 = vcombine.high %v461, %v493
  %v507 = vcombine.low %v468, %v500
  %v508 = vcombine.high %v468, %v500
  %v509 = vcombine.low %v147, %v170
  %v510 = vcombine.high %v147, %v170
  %v512 = vunpack.c.l.s4 1983009808
  %v513 = vunpack.c.0.s8 %v512
  %v514 = vlaneseq
  %v515 = vshrl.u32 %v514, 7
  %v516 = vsub.s32 %v513, %v515
  %v517 = vrot.slane %v509, %v516
  %v519 = vunpack.c.l.s4 1983009808
  %v520 = vunpack.c.0.s8 %v519
  %v521 = vlaneseq
  %v522 = vshrl.u32 %v521, 7
  %v523 = vsub.s32 %v520, %v522
  %v524 = vrot.slane %v510, %v523
  %v525 = vcombine.low %v158, %v182
  %v526 = vcombine.high %v158, %v182
  %v528 = vunpack.c.l.s4 1983009808
  %v529 = vunpack.c.0.s8 %v528
  %v530 = vlaneseq
  %v531 = vshrl.u32 %v530, 7
  %v532 = vsub.s32 %v529, %v531
  %v533 = vrot.slane %v525, %v532
  %v535 = vunpack.c.l.s4 1983009808
  %v536 = vunpack.c.0.s8 %v535
  %v537 = vlaneseq
  %v538 = vshrl.u32 %v537, 7
  %v539 = vsub.s32 %v536, %v538
  %v540 = vrot.slane %v526, %v539
  %v541 = vcombine.low %v194, %v218
  %v542 = vcombine.high %v194, %v218
  %v544 = vunpack.c.l.s4 1983009808
  %v545 = vunpack.c.0.s8 %v544
  %v546 = vlaneseq
  %v547 = vshrl.u32 %v546, 7
  %v548 = vsub.s32 %v545, %v547
  %v549 = vrot.slane %v541, %v548
  %v551 = vunpack.c.l.s4 1983009808
  %v552 = vunpack.c.0.s8 %v551
  %v553 = vlaneseq
  %v554 = vshrl.u32 %v553, 7
  %v555 = vsub.s32 %v552, %v554
  %v556 = vrot.slane %v542, %v555
  %v557 = vcombine.low %v206, %v230
  %v558 = vcombine.high %v206, %v230
  %v560 = vunpack.c.l.s4 1983009808
  %v561 = vunpack.c.0.s8 %v560
  %v562 = vlaneseq
  %v563 = vshrl.u32 %v562, 7
  %v564 = vsub.s32 %v561, %v563
  %v565 = vrot.slane %v557, %v564
  %v567 = vunpack.c.l.s4 1983009808
  %v568 = vunpack.c.0.s8 %v567
  %v569 = vlaneseq
  %v570 = vshrl.u32 %v569, 7
  %v571 = vsub.s32 %v568, %v570
  %v572 = vrot.slane %v558, %v571
  %v573 = vcombine.low %v517, %v533
  %v574 = vcombine.high %v517, %v533
  %v576 = vunpack.c.l.s4 1934713408
  %v577 = vunpack.c.0.s8 %v576
  %v578 = vlaneseq
  %v579 = vshrl.u32 %v578, 7
  %v580 = vsub.s32 %v577, %v579
  %v581 = vrot.slane %v573, %v580
  %v583 = vunpack.c.l.s4 1934713408
  %v584 = vunpack.c.0.s8 %v583
  %v585 = vlaneseq
  %v586 = vshrl.u32 %v585, 7
  %v587 = vsub.s32 %v584, %v586
  %v588 = vrot.slane %v574, %v587
  %v589 = vcombine.low %v524, %v540
  %v590 = vcombine.high %v524, %v540
  %v592 = vunpack.c.l.s4 1934713408
  %v593 = vunpack.c.0.s8 %v592
  %v594 = vlaneseq
  %v595 = vshrl.u32 %v594, 7
  %v596 = vsub.s32 %v593, %v595
  %v597 = vrot.slane %v589, %v596
  %v599 = vunpack.c.l.s4 1934713408
  %v600 = vunpack.c.0.s8 %v599
  %v601 = vlaneseq
  %v602 = vshrl.u32 %v601, 7
  %v603 = vsub.s32 %v600, %v602
  %v604 = vrot.slane %v590, %v603
  %v605 = vcombine.low %v549, %v565
  %v606 = vcombine.high %v549, %v565
  %v608 = vunpack.c.l.s4 1934713408
  %v609 = vunpack.c.0.s8 %v608
  %v610 = vlaneseq
  %v611 = vshrl.u32 %v610, 7
  %v612 = vsub.s32 %v609, %v611
  %v613 = vrot.slane %v605, %v612
  %v615 = vunpack.c.l.s4 1934713408
  %v616 = vunpack.c.0.s8 %v615
  %v617 = vlaneseq
  %v618 = vshrl.u32 %v617, 7
  %v619 = vsub.s32 %v616, %v618
  %v620 = vrot.slane %v606, %v619
  %v621 = vcombine.low %v556, %v572
  %v622 = vcombine.high %v556, %v572
  %v624 = vunpack.c.l.s4 1934713408
  %v625 = vunpack.c.0.s8 %v624
  %v626 = vlaneseq
  %v627 = vshrl.u32 %v626, 7
  %v628 = vsub.s32 %v625, %v627
  %v629 = vrot.slane %v621, %v628
  %v631 = vunpack.c.l.s4 1934713408
  %v632 = vunpack.c.0.s8 %v631
  %v633 = vlaneseq
  %v634 = vshrl.u32 %v633, 7
  %v635 = vsub.s32 %v632, %v634
  %v636 = vrot.slane %v622, %v635
  %v637 = vcombine.low %v581, %v613
  %v638 = vcombine.high %v581, %v613
  %v639 = vcombine.low %v588, %v620
  %v640 = vcombine.high %v588, %v620
  %v641 = vcombine.low %v597, %v629
  %v642 = vcombine.high %v597, %v629
  %v643 = vcombine.low %v604, %v636
  %v644 = vcombine.high %v604, %v636
  %v645 = vcombine.low %v148, %v172
  %v646 = vcombine.high %v148, %v172
  %v648 = vunpack.c.l.s4 1983009808
  %v649 = vunpack.c.0.s8 %v648
  %v650 = vlaneseq
  %v651 = vshrl.u32 %v650, 7
  %v652 = vsub.s32 %v649, %v651
  %v653 = vrot.slane %v645, %v652
  %v655 = vunpack.c.l.s4 1983009808
  %v656 = vunpack.c.0.s8 %v655
  %v657 = vlaneseq
  %v658 = vshrl.u32 %v657, 7
  %v659 = vsub.s32 %v656, %v658
  %v660 = vrot.slane %v646, %v659
  %v661 = vcombine.low %v160, %v184
  %v662 = vcombine.high %v160, %v184
  %v664 = vunpack.c.l.s4 1983009808
  %v665 = vunpack.c.0.s8 %v664
  %v666 = vlaneseq
  %v667 = vshrl.u32 %v666, 7
  %v668 = vsub.s32 %v665, %v667
  %v669 = vrot.slane %v661, %v668
  %v671 = vunpack.c.l.s4 1983009808
  %v672 = vunpack.c.0.s8 %v671
  %v673 = vlaneseq
  %v674 = vshrl.u32 %v673, 7
  %v675 = vsub.s32 %v672, %v674
  %v676 = vrot.slane %v662, %v675
  %v677 = vcombine.low %v196, %v220
  %v678 = vcombine.high %v196, %v220
  %v680 = vunpack.c.l.s4 1983009808
  %v681 = vunpack.c.0.s8 %v680
  %v682 = vlaneseq
  %v683 = vshrl.u32 %v682, 7
  %v684 = vsub.s32 %v681, %v683
  %v685 = vrot.slane %v677, %v684
  %v687 = vunpack.c.l.s4 1983009808
  %v688 = vunpack.c.0.s8 %v687
  %v689 = vlaneseq
  %v690 = vshrl.u32 %v689, 7
  %v691 = vsub.s32 %v688, %v690
  %v692 = vrot.slane %v678, %v691
  %v693 = vcombine.low %v208, %v232
  %v694 = vcombine.high %v208, %v232
  %v696 = vunpack.c.l.s4 1983009808
  %v697 = vunpack.c.0.s8 %v696
  %v698 = vlaneseq
  %v699 = vshrl.u32 %v698, 7
  %v700 = vsub.s32 %v697, %v699
  %v701 = vrot.slane %v693, %v700
  %v703 = vunpack.c.l.s4 1983009808
  %v704 = vunpack.c.0.s8 %v703
  %v705 = vlaneseq
  %v706 = vshrl.u32 %v705, 7
  %v707 = vsub.s32 %v704, %v706
  %v708 = vrot.slane %v694, %v707
  %v709 = vcombine.low %v653, %v669
  %v710 = vcombine.high %v653, %v669
  %v712 = vunpack.c.l.s4 1934713408
  %v713 = vunpack.c.0.s8 %v712
  %v714 = vlaneseq
  %v715 = vshrl.u32 %v714, 7
  %v716 = vsub.s32 %v713, %v715
  %v717 = vrot.slane %v709, %v716
  %v719 = vunpack.c.l.s4 1934713408
  %v720 = vunpack.c.0.s8 %v719
  %v721 = vlaneseq
  %v722 = vshrl.u32 %v721, 7
  %v723 = vsub.s32 %v720, %v722
  %v724 = vrot.slane %v710, %v723
  %v725 = vcombine.low %v660, %v676
  %v726 = vcombine.high %v660, %v676
  %v728 = vunpack.c.l.s4 1934713408
  %v729 = vunpack.c.0.s8 %v728
  %v730 = vlaneseq
  %v731 = vshrl.u32 %v730, 7
  %v732 = vsub.s32 %v729, %v731
  %v733 = vrot.slane %v725, %v732
  %v735 = vunpack.c.l.s4 1934713408
  %v736 = vunpack.c.0.s8 %v735
  %v737 = vlaneseq
  %v738 = vshrl.u32 %v737, 7
  %v739 = vsub.s32 %v736, %v738
  %v740 = vrot.slane %v726, %v739
  %v741 = vcombine.low %v685, %v701
  %v742 = vcombine.high %v685, %v701
  %v744 = vunpack.c.l.s4 1934713408
  %v745 = vunpack.c.0.s8 %v744
  %v746 = vlaneseq
  %v747 = vshrl.u32 %v746, 7
  %v748 = vsub.s32 %v745, %v747
  %v749 = vrot.slane %v741, %v748
  %v751 = vunpack.c.l.s4 1934713408
  %v752 = vunpack.c.0.s8 %v751
  %v753 = vlaneseq
  %v754 = vshrl.u32 %v753, 7
  %v755 = vsub.s32 %v752, %v754
  %v756 = vrot.slane %v742, %v755
  %v757 = vcombine.low %v692, %v708
  %v758 = vcombine.high %v692, %v708
  %v760 = vunpack.c.l.s4 1934713408
  %v761 = vunpack.c.0.s8 %v760
  %v762 = vlaneseq
  %v763 = vshrl.u32 %v762, 7
  %v764 = vsub.s32 %v761, %v763
  %v765 = vrot.slane %v757, %v764
  %v767 = vunpack.c.l.s4 1934713408
  %v768 = vunpack.c.0.s8 %v767
  %v769 = vlaneseq
  %v770 = vshrl.u32 %v769, 7
  %v771 = vsub.s32 %v768, %v770
  %v772 = vrot.slane %v758, %v771
  %v773 = vcombine.low %v717, %v749
  %v774 = vcombine.high %v717, %v749
  %v775 = vcombine.low %v724, %v756
  %v776 = vcombine.high %v724, %v756
  %v777 = vcombine.low %v733, %v765
  %v778 = vcombine.high %v733, %v765
  %v779 = vcombine.low %v740, %v772
  %v780 = vcombine.high %v740, %v772
  %vm781 = vcmask 15360
  %v782 = vsel %vm781, %v365, 0.0
  %783 = vadd.xlane.f32.xlu0 %v782
  %v784 = vpop.xlane.xlu0 %783
  %v785 = vsel %vm781, %v366, 0.0
  %786 = vadd.xlane.f32.xlu0 %v785
  %v787 = vpop.xlane.xlu0 %786
  %v788 = vsel %vm781, %v367, 0.0
  %789 = vadd.xlane.f32.xlu0 %v788
  %v790 = vpop.xlane.xlu0 %789
  %v791 = vsel %vm781, %v368, 0.0
  %792 = vadd.xlane.f32.xlu0 %v791
  %v793 = vpop.xlane.xlu0 %792
  %v794 = vsel %vm781, %v369, 0.0
  %795 = vadd.xlane.f32.xlu0 %v794
  %v796 = vpop.xlane.xlu0 %795
  %v797 = vsel %vm781, %v370, 0.0
  %798 = vadd.xlane.f32.xlu0 %v797
  %v799 = vpop.xlane.xlu0 %798
  %v800 = vsel %vm781, %v371, 0.0
  %801 = vadd.xlane.f32.xlu0 %v800
  %v802 = vpop.xlane.xlu0 %801
  %v803 = vsel %vm781, %v372, 0.0
  %804 = vadd.xlane.f32.xlu0 %v803
  %v805 = vpop.xlane.xlu0 %804
  %v806 = vsel %vm781, %v501, 0.0
  %807 = vadd.xlane.f32.xlu0 %v806
  %v808 = vpop.xlane.xlu0 %807
  %v809 = vsel %vm781, %v502, 0.0
  %810 = vadd.xlane.f32.xlu0 %v809
  %v811 = vpop.xlane.xlu0 %810
  %v812 = vsel %vm781, %v503, 0.0
  %813 = vadd.xlane.f32.xlu0 %v812
  %v814 = vpop.xlane.xlu0 %813
  %v815 = vsel %vm781, %v504, 0.0
  %816 = vadd.xlane.f32.xlu0 %v815
  %v817 = vpop.xlane.xlu0 %816
  %v818 = vsel %vm781, %v505, 0.0
  %819 = vadd.xlane.f32.xlu0 %v818
  %v820 = vpop.xlane.xlu0 %819
  %v821 = vsel %vm781, %v506, 0.0
  %822 = vadd.xlane.f32.xlu0 %v821
  %v823 = vpop.xlane.xlu0 %822
  %v824 = vsel %vm781, %v507, 0.0
  %825 = vadd.xlane.f32.xlu0 %v824
  %v826 = vpop.xlane.xlu0 %825
  %v827 = vsel %vm781, %v508, 0.0
  %828 = vadd.xlane.f32.xlu0 %v827
  %v829 = vpop.xlane.xlu0 %828
  %v830 = vsel %vm781, %v637, 0.0
  %831 = vadd.xlane.f32.xlu0 %v830
  %v832 = vpop.xlane.xlu0 %831
  %v833 = vsel %vm781, %v638, 0.0
  %834 = vadd.xlane.f32.xlu0 %v833
  %v835 = vpop.xlane.xlu0 %834
  %v836 = vsel %vm781, %v639, 0.0
  %837 = vadd.xlane.f32.xlu0 %v836
  %v838 = vpop.xlane.xlu0 %837
  %v839 = vsel %vm781, %v640, 0.0
  %840 = vadd.xlane.f32.xlu0 %v839
  %v841 = vpop.xlane.xlu0 %840
  %v842 = vsel %vm781, %v641, 0.0
  %843 = vadd.xlane.f32.xlu0 %v842
  %v844 = vpop.xlane.xlu0 %843
  %v845 = vsel %vm781, %v642, 0.0
  %846 = vadd.xlane.f32.xlu0 %v845
  %v847 = vpop.xlane.xlu0 %846
  %v848 = vsel %vm781, %v643, 0.0
  %849 = vadd.xlane.f32.xlu0 %v848
  %v850 = vpop.xlane.xlu0 %849
  %v851 = vsel %vm781, %v644, 0.0
  %852 = vadd.xlane.f32.xlu0 %v851
  %v853 = vpop.xlane.xlu0 %852
  %v854 = vsel %vm781, %v773, 0.0
  %855 = vadd.xlane.f32.xlu0 %v854
  %v856 = vpop.xlane.xlu0 %855
  %v857 = vsel %vm781, %v774, 0.0
  %858 = vadd.xlane.f32.xlu0 %v857
  %v859 = vpop.xlane.xlu0 %858
  %v860 = vsel %vm781, %v775, 0.0
  %861 = vadd.xlane.f32.xlu0 %v860
  %v862 = vpop.xlane.xlu0 %861
  %v863 = vsel %vm781, %v776, 0.0
  %864 = vadd.xlane.f32.xlu0 %v863
  %v865 = vpop.xlane.xlu0 %864
  %v866 = vsel %vm781, %v777, 0.0
  %867 = vadd.xlane.f32.xlu0 %v866
  %v868 = vpop.xlane.xlu0 %867
  %v869 = vsel %vm781, %v778, 0.0
  %870 = vadd.xlane.f32.xlu0 %v869
  %v871 = vpop.xlane.xlu0 %870
  %v872 = vsel %vm781, %v779, 0.0
  %873 = vadd.xlane.f32.xlu0 %v872
  %v874 = vpop.xlane.xlu0 %873
  %v875 = vsel %vm781, %v780, 0.0
  %876 = vadd.xlane.f32.xlu0 %v875
  %v877 = vpop.xlane.xlu0 %876
  %v878 = vrcp.pop 2.0
  %v879 = vmul.f32 %v784, %v878
  %v880 = vmul.f32 %v787, %v878
  %v881 = vmul.f32 %v790, %v878
  %v882 = vmul.f32 %v793, %v878
  %v883 = vmul.f32 %v796, %v878
  %v884 = vmul.f32 %v799, %v878
  %v885 = vmul.f32 %v802, %v878
  %v886 = vmul.f32 %v805, %v878
  %v887 = vmul.f32 %v808, %v878
  %v888 = vmul.f32 %v811, %v878
  %v889 = vmul.f32 %v814, %v878
  %v890 = vmul.f32 %v817, %v878
  %v891 = vmul.f32 %v820, %v878
  %v892 = vmul.f32 %v823, %v878
  %v893 = vmul.f32 %v826, %v878
  %v894 = vmul.f32 %v829, %v878
  %v895 = vmul.f32 %v832, %v878
  %v896 = vmul.f32 %v835, %v878
  %v897 = vmul.f32 %v838, %v878
  %v898 = vmul.f32 %v841, %v878
  %v899 = vmul.f32 %v844, %v878
  %v900 = vmul.f32 %v847, %v878
  %v901 = vmul.f32 %v850, %v878
  %v902 = vmul.f32 %v853, %v878
  %v903 = vmul.f32 %v856, %v878
  %v904 = vmul.f32 %v859, %v878
  %v905 = vmul.f32 %v862, %v878
  %v906 = vmul.f32 %v865, %v878
  %v907 = vmul.f32 %v868, %v878
  %v908 = vmul.f32 %v871, %v878
  %v909 = vmul.f32 %v874, %v878
  %v910 = vmul.f32 %v877, %v878
  %v943 = vlaneseq
  %v944 = vand.u32 %v943, 127
  %v945 = vlaneseq
  %v946 = vshrl.u32 %v945, 7
  %v947 = vsub.s32 %v944, %v946
  %v948 = vrot.slane %v879, %v947
  %v949 = vlaneseq
  %v950 = vshrl.u32 %v949, 7
  %v951 = vsub.s32 %v944, %v950
  %v952 = vrot.slane %v880, %v951
  %v953 = vlaneseq
  %v954 = vshrl.u32 %v953, 7
  %v955 = vsub.s32 %v944, %v954
  %v956 = vrot.slane %v881, %v955
  %v957 = vlaneseq
  %v958 = vshrl.u32 %v957, 7
  %v959 = vsub.s32 %v944, %v958
  %v960 = vrot.slane %v882, %v959
  %v961 = vlaneseq
  %v962 = vshrl.u32 %v961, 7
  %v963 = vsub.s32 %v944, %v962
  %v964 = vrot.slane %v883, %v963
  %v965 = vlaneseq
  %v966 = vshrl.u32 %v965, 7
  %v967 = vsub.s32 %v944, %v966
  %v968 = vrot.slane %v884, %v967
  %v969 = vlaneseq
  %v970 = vshrl.u32 %v969, 7
  %v971 = vsub.s32 %v944, %v970
  %v972 = vrot.slane %v885, %v971
  %v973 = vlaneseq
  %v974 = vshrl.u32 %v973, 7
  %v975 = vsub.s32 %v944, %v974
  %v976 = vrot.slane %v886, %v975
  %v977 = vlaneseq
  %v978 = vshrl.u32 %v977, 7
  %v979 = vsub.s32 %v944, %v978
  %v980 = vrot.slane %v887, %v979
  %v981 = vlaneseq
  %v982 = vshrl.u32 %v981, 7
  %v983 = vsub.s32 %v944, %v982
  %v984 = vrot.slane %v888, %v983
  %v985 = vlaneseq
  %v986 = vshrl.u32 %v985, 7
  %v987 = vsub.s32 %v944, %v986
  %v988 = vrot.slane %v889, %v987
  %v989 = vlaneseq
  %v990 = vshrl.u32 %v989, 7
  %v991 = vsub.s32 %v944, %v990
  %v992 = vrot.slane %v890, %v991
  %v993 = vlaneseq
  %v994 = vshrl.u32 %v993, 7
  %v995 = vsub.s32 %v944, %v994
  %v996 = vrot.slane %v891, %v995
  %v997 = vlaneseq
  %v998 = vshrl.u32 %v997, 7
  %v999 = vsub.s32 %v944, %v998
  %v1000 = vrot.slane %v892, %v999
  %v1001 = vlaneseq
  %v1002 = vshrl.u32 %v1001, 7
  %v1003 = vsub.s32 %v944, %v1002
  %v1004 = vrot.slane %v893, %v1003
  %v1005 = vlaneseq
  %v1006 = vshrl.u32 %v1005, 7
  %v1007 = vsub.s32 %v944, %v1006
  %v1008 = vrot.slane %v894, %v1007
  %v1009 = vlaneseq
  %v1010 = vshrl.u32 %v1009, 7
  %v1011 = vsub.s32 %v944, %v1010
  %v1012 = vrot.slane %v895, %v1011
  %v1013 = vlaneseq
  %v1014 = vshrl.u32 %v1013, 7
  %v1015 = vsub.s32 %v944, %v1014
  %v1016 = vrot.slane %v896, %v1015
  %v1017 = vlaneseq
  %v1018 = vshrl.u32 %v1017, 7
  %v1019 = vsub.s32 %v944, %v1018
  %v1020 = vrot.slane %v897, %v1019
  %v1021 = vlaneseq
  %v1022 = vshrl.u32 %v1021, 7
  %v1023 = vsub.s32 %v944, %v1022
  %v1024 = vrot.slane %v898, %v1023
  %v1025 = vlaneseq
  %v1026 = vshrl.u32 %v1025, 7
  %v1027 = vsub.s32 %v944, %v1026
  %v1028 = vrot.slane %v899, %v1027
  %v1029 = vlaneseq
  %v1030 = vshrl.u32 %v1029, 7
  %v1031 = vsub.s32 %v944, %v1030
  %v1032 = vrot.slane %v900, %v1031
  %v1033 = vlaneseq
  %v1034 = vshrl.u32 %v1033, 7
  %v1035 = vsub.s32 %v944, %v1034
  %v1036 = vrot.slane %v901, %v1035
  %v1037 = vlaneseq
  %v1038 = vshrl.u32 %v1037, 7
  %v1039 = vsub.s32 %v944, %v1038
  %v1040 = vrot.slane %v902, %v1039
  %v1041 = vlaneseq
  %v1042 = vshrl.u32 %v1041, 7
  %v1043 = vsub.s32 %v944, %v1042
  %v1044 = vrot.slane %v903, %v1043
  %v1045 = vlaneseq
  %v1046 = vshrl.u32 %v1045, 7
  %v1047 = vsub.s32 %v944, %v1046
  %v1048 = vrot.slane %v904, %v1047
  %v1049 = vlaneseq
  %v1050 = vshrl.u32 %v1049, 7
  %v1051 = vsub.s32 %v944, %v1050
  %v1052 = vrot.slane %v905, %v1051
  %v1053 = vlaneseq
  %v1054 = vshrl.u32 %v1053, 7
  %v1055 = vsub.s32 %v944, %v1054
  %v1056 = vrot.slane %v906, %v1055
  %v1057 = vlaneseq
  %v1058 = vshrl.u32 %v1057, 7
  %v1059 = vsub.s32 %v944, %v1058
  %v1060 = vrot.slane %v907, %v1059
  %v1061 = vlaneseq
  %v1062 = vshrl.u32 %v1061, 7
  %v1063 = vsub.s32 %v944, %v1062
  %v1064 = vrot.slane %v908, %v1063
  %v1065 = vlaneseq
  %v1066 = vshrl.u32 %v1065, 7
  %v1067 = vsub.s32 %v944, %v1066
  %v1068 = vrot.slane %v909, %v1067
  %v1069 = vlaneseq
  %v1070 = vshrl.u32 %v1069, 7
  %v1071 = vsub.s32 %v944, %v1070
  %v1072 = vrot.slane %v910, %v1071
  %vm1073 = vcmask 1041409
  %v1074 = vsel %vm1073, %v952, %v948
  %vm1075 = vcmask 1042434
  %v1076 = vsel %vm1075, %v956, %v1074
  %vm1077 = vcmask 1043459
  %v1078 = vsel %vm1077, %v960, %v1076
  %vm1079 = vcmask 1044484
  %v1080 = vsel %vm1079, %v964, %v1078
  %vm1081 = vcmask 1045509
  %v1082 = vsel %vm1081, %v968, %v1080
  %vm1083 = vcmask 1046534
  %v1084 = vsel %vm1083, %v972, %v1082
  %vm1085 = vcmask 1047559
  %v1086 = vsel %vm1085, %v976, %v1084
  %v1087 = vsel %vm1073, %v984, %v980
  %v1088 = vsel %vm1075, %v988, %v1087
  %v1089 = vsel %vm1077, %v992, %v1088
  %v1090 = vsel %vm1079, %v996, %v1089
  %v1091 = vsel %vm1081, %v1000, %v1090
  %v1092 = vsel %vm1083, %v1004, %v1091
  %v1093 = vsel %vm1085, %v1008, %v1092
  %v1094 = vsel %vm1073, %v1016, %v1012
  %v1095 = vsel %vm1075, %v1020, %v1094
  %v1096 = vsel %vm1077, %v1024, %v1095
  %v1097 = vsel %vm1079, %v1028, %v1096
  %v1098 = vsel %vm1081, %v1032, %v1097
  %v1099 = vsel %vm1083, %v1036, %v1098
  %v1100 = vsel %vm1085, %v1040, %v1099
  %v1101 = vsel %vm1073, %v1048, %v1044
  %v1102 = vsel %vm1075, %v1052, %v1101
  %v1103 = vsel %vm1077, %v1056, %v1102
  %v1104 = vsel %vm1079, %v1060, %v1103
  %v1105 = vsel %vm1081, %v1064, %v1104
  %v1106 = vsel %vm1083, %v1068, %v1105
  %v1107 = vsel %vm1085, %v1072, %v1106
  %vm1112 = vcmask 64512
  %1113 = vst.msk [vmem:[%s3] sm:$0xff] %vm1112, %v1086
  %1114 = vst.msk [vmem:[%s3 + $0x8] sm:$0xff] %vm1112, %v1093
  %1115 = vst.msk [vmem:[%s3 + $0x10] sm:$0xff] %vm1112, %v1100
  %1116 = vst.msk [vmem:[%s3 + $0x18] sm:$0xff] %vm1112, %v1107
  %s1117 = scalar_lea.vmem %s0, 4
  %v1118 = vld [vmem:[%s1117] sm:$0xf]
  %v1120 = vsel %vm56, %v1118, 0
  %1122 = vmatprep.subr.mxu0 0.0
  %1123 = vmatpush1.msra.mxu0 %v1120
  %1124 = vmatprep.subr.mxu0 0.0
  %1125 = vmatpush1.msra.mxu0 0.0
  %1126 = vmatprep.subr.mxu0 0.0
  %1127 = vmatpush1.msra.mxu0 0.0
  %1128 = vmatprep.subr.mxu0 0.0
  %1129 = vmatpush1.msra.mxu0 0.0
  %1130 = vmatprep.subr.mxu0 0.0
  %1131 = vmatpush1.msra.mxu0 0.0
  %1132 = vmatprep.subr.mxu0 0.0
  %1133 = vmatpush1.msra.mxu0 0.0
  %1134 = vmatprep.subr.mxu0 0.0
  %1135 = vmatpush1.msra.mxu0 0.0
  %1136 = vmatprep.subr.mxu0 0.0
  %1137 = vmatpush1.msra.mxu0 0.0
  %1138 = vmatprep.subr.mxu0 0.0
  %1139 = vmatpush1.msra.mxu0 0.0
  %1140 = vmatprep.subr.mxu0 0.0
  %1141 = vmatpush1.msra.mxu0 0.0
  %1142 = vmatprep.subr.mxu0 0.0
  %1143 = vmatpush1.msra.mxu0 0.0
  %1144 = vmatprep.subr.mxu0 0.0
  %1145 = vmatpush1.msra.mxu0 0.0
  %1146 = vmatprep.subr.mxu0 0.0
  %1147 = vmatpush1.msra.mxu0 0.0
  %1148 = vmatprep.subr.mxu0 0.0
  %1149 = vmatpush1.msra.mxu0 0.0
  %1150 = vmatprep.subr.mxu0 0.0
  %1151 = vmatpush1.msra.mxu0 0.0
  %1152 = vmatprep.subr.mxu0 0.0
  %1153 = vmatpush1.msra.mxu0 0.0
  %1154 = vmatprep.subr.mxu0 0.0
  %1155 = vmatpush1.msra.mxu0 0.0
  %1156 = vmatprep.subr.mxu0 0.0
  %1157 = vmatpush1.msra.mxu0 0.0
  %1158 = vmatprep.subr.mxu0 0.0
  %1159 = vmatpush1.msra.mxu0 0.0
  %1160 = vmatprep.subr.mxu0 0.0
  %1161 = vmatpush1.msra.mxu0 0.0
  %1162 = vmatprep.subr.mxu0 0.0
  %1163 = vmatpush1.msra.mxu0 0.0
  %1164 = vmatprep.subr.mxu0 0.0
  %1165 = vmatpush1.msra.mxu0 0.0
  %1166 = vmatprep.subr.mxu0 0.0
  %1167 = vmatpush1.msra.mxu0 0.0
  %1168 = vmatprep.subr.mxu0 0.0
  %1169 = vmatpush1.msra.mxu0 0.0
  %1170 = vmatprep.subr.mxu0 0.0
  %1171 = vmatpush1.msra.mxu0 0.0
  %1172 = vmatprep.subr.mxu0 0.0
  %1173 = vmatpush1.msra.mxu0 0.0
  %1174 = vmatprep.subr.mxu0 0.0
  %1175 = vmatpush1.msra.mxu0 0.0
  %1176 = vmatprep.subr.mxu0 0.0
  %1177 = vmatpush1.msra.mxu0 0.0
  %1178 = vmatprep.subr.mxu0 0.0
  %1179 = vmatpush1.msra.mxu0 0.0
  %1180 = vmatprep.subr.mxu0 0.0
  %1181 = vmatpush1.msra.mxu0 0.0
  %1182 = vmatprep.subr.mxu0 0.0
  %1183 = vmatpush1.msra.mxu0 0.0
  %1184 = vmatprep.subr.mxu0 0.0
  %1185 = vmatpush1.msra.mxu0 0.0
  %1186 = vmatprep.mubr.f32.mxu0 0.0
  %1187 = vmatmul.mubr.f32.gmra.mrb[0].mxu0 %v45
  %v1188 = vpop.f32.mrb[0].mxu0
  %v1189 = vadd.f32 %v25, %v1188
  %v1190 = vpop.f32.mrb[0].mxu0
  %1191 = vmatprep.mubr.f32.mxu0 0.0
  %1192 = vmatmul.mubr.f32.gmra.mrb[0].mxu0 %v48
  %v1193 = vpop.f32.mrb[0].mxu0
  %v1194 = vadd.f32 %v30, %v1193
  %v1195 = vpop.f32.mrb[0].mxu0
  %1196 = vmatprep.mubr.f32.mxu0 0.0
  %1197 = vmatmul.mubr.f32.gmra.mrb[0].mxu0 %v51
  %v1198 = vpop.f32.mrb[0].mxu0
  %v1199 = vadd.f32 %v35, %v1198
  %v1200 = vpop.f32.mrb[0].mxu0
  %1201 = vmatprep.mubr.f32.mxu0 0.0
  %1202 = vmatmul.mubr.f32.gmra.mrb[0].mxu0 %v54
  %v1203 = vpop.f32.mrb[0].mxu0
  %v1204 = vadd.f32 %v40, %v1203
  %v1205 = vpop.f32.mrb[0].mxu0
  %1206 = vdwg.mxu0
  %v1207 = vmax.f32 %v1189, 0.0
  %v1208 = vmax.f32 %v1194, 0.0
  %v1209 = vmax.f32 %v1199, 0.0
  %v1210 = vmax.f32 %v1204, 0.0
  %1215 = vrot.lane.b32.xlu0 %v1207, 126
  %v1216 = vpop.permute.xlu0 %1215
  %1217 = vrot.lane.b32.xlu0 %v1208, 126
  %v1218 = vpop.permute.xlu0 %1217
  %1219 = vrot.lane.b32.xlu0 %v1209, 126
  %v1220 = vpop.permute.xlu0 %1219
  %1221 = vrot.lane.b32.xlu0 %v1210, 126
  %v1222 = vpop.permute.xlu0 %1221
  %1227 = vrot.lane.b32.xlu0 %v1207, 124
  %v1228 = vpop.permute.xlu0 %1227
  %1229 = vrot.lane.b32.xlu0 %v1208, 124
  %v1230 = vpop.permute.xlu0 %1229
  %1231 = vrot.lane.b32.xlu0 %v1209, 124
  %v1232 = vpop.permute.xlu0 %1231
  %1233 = vrot.lane.b32.xlu0 %v1210, 124
  %v1234 = vpop.permute.xlu0 %1233
  %1239 = vrot.lane.b32.xlu0 %v1207, 122
  %v1240 = vpop.permute.xlu0 %1239
  %1241 = vrot.lane.b32.xlu0 %v1208, 122
  %v1242 = vpop.permute.xlu0 %1241
  %1243 = vrot.lane.b32.xlu0 %v1209, 122
  %v1244 = vpop.permute.xlu0 %1243
  %1245 = vrot.lane.b32.xlu0 %v1210, 122
  %v1246 = vpop.permute.xlu0 %1245
  %1251 = vrot.lane.b32.xlu0 %v1207, 120
  %v1252 = vpop.permute.xlu0 %1251
  %1253 = vrot.lane.b32.xlu0 %v1208, 120
  %v1254 = vpop.permute.xlu0 %1253
  %1255 = vrot.lane.b32.xlu0 %v1209, 120
  %v1256 = vpop.permute.xlu0 %1255
  %1257 = vrot.lane.b32.xlu0 %v1210, 120
  %v1258 = vpop.permute.xlu0 %1257
  %1263 = vrot.lane.b32.xlu0 %v1207, 118
  %v1264 = vpop.permute.xlu0 %1263
  %1265 = vrot.lane.b32.xlu0 %v1208, 118
  %v1266 = vpop.permute.xlu0 %1265
  %1267 = vrot.lane.b32.xlu0 %v1209, 118
  %v1268 = vpop.permute.xlu0 %1267
  %1269 = vrot.lane.b32.xlu0 %v1210, 118
  %v1270 = vpop.permute.xlu0 %1269
  %1275 = vrot.lane.b32.xlu0 %v1207, 116
  %v1276 = vpop.permute.xlu0 %1275
  %1277 = vrot.lane.b32.xlu0 %v1208, 116
  %v1278 = vpop.permute.xlu0 %1277
  %1279 = vrot.lane.b32.xlu0 %v1209, 116
  %v1280 = vpop.permute.xlu0 %1279
  %1281 = vrot.lane.b32.xlu0 %v1210, 116
  %v1282 = vpop.permute.xlu0 %1281
  %1287 = vrot.lane.b32.xlu0 %v1207, 114
  %v1288 = vpop.permute.xlu0 %1287
  %1289 = vrot.lane.b32.xlu0 %v1208, 114
  %v1290 = vpop.permute.xlu0 %1289
  %1291 = vrot.lane.b32.xlu0 %v1209, 114
  %v1292 = vpop.permute.xlu0 %1291
  %1293 = vrot.lane.b32.xlu0 %v1210, 114
  %v1294 = vpop.permute.xlu0 %1293
  %v1299 = vcombine.low %v1207, %v1228
  %v1300 = vcombine.high %v1207, %v1228
  %v1302 = vunpack.c.l.s4 1983009808
  %v1303 = vunpack.c.0.s8 %v1302
  %v1304 = vlaneseq
  %v1305 = vshrl.u32 %v1304, 7
  %v1306 = vsub.s32 %v1303, %v1305
  %v1307 = vrot.slane %v1299, %v1306
  %v1309 = vunpack.c.l.s4 1983009808
  %v1310 = vunpack.c.0.s8 %v1309
  %v1311 = vlaneseq
  %v1312 = vshrl.u32 %v1311, 7
  %v1313 = vsub.s32 %v1310, %v1312
  %v1314 = vrot.slane %v1300, %v1313
  %v1315 = vcombine.low %v1216, %v1240
  %v1316 = vcombine.high %v1216, %v1240
  %v1318 = vunpack.c.l.s4 1983009808
  %v1319 = vunpack.c.0.s8 %v1318
  %v1320 = vlaneseq
  %v1321 = vshrl.u32 %v1320, 7
  %v1322 = vsub.s32 %v1319, %v1321
  %v1323 = vrot.slane %v1315, %v1322
  %v1325 = vunpack.c.l.s4 1983009808
  %v1326 = vunpack.c.0.s8 %v1325
  %v1327 = vlaneseq
  %v1328 = vshrl.u32 %v1327, 7
  %v1329 = vsub.s32 %v1326, %v1328
  %v1330 = vrot.slane %v1316, %v1329
  %v1331 = vcombine.low %v1252, %v1276
  %v1332 = vcombine.high %v1252, %v1276
  %v1334 = vunpack.c.l.s4 1983009808
  %v1335 = vunpack.c.0.s8 %v1334
  %v1336 = vlaneseq
  %v1337 = vshrl.u32 %v1336, 7
  %v1338 = vsub.s32 %v1335, %v1337
  %v1339 = vrot.slane %v1331, %v1338
  %v1341 = vunpack.c.l.s4 1983009808
  %v1342 = vunpack.c.0.s8 %v1341
  %v1343 = vlaneseq
  %v1344 = vshrl.u32 %v1343, 7
  %v1345 = vsub.s32 %v1342, %v1344
  %v1346 = vrot.slane %v1332, %v1345
  %v1347 = vcombine.low %v1264, %v1288
  %v1348 = vcombine.high %v1264, %v1288
  %v1350 = vunpack.c.l.s4 1983009808
  %v1351 = vunpack.c.0.s8 %v1350
  %v1352 = vlaneseq
  %v1353 = vshrl.u32 %v1352, 7
  %v1354 = vsub.s32 %v1351, %v1353
  %v1355 = vrot.slane %v1347, %v1354
  %v1357 = vunpack.c.l.s4 1983009808
  %v1358 = vunpack.c.0.s8 %v1357
  %v1359 = vlaneseq
  %v1360 = vshrl.u32 %v1359, 7
  %v1361 = vsub.s32 %v1358, %v1360
  %v1362 = vrot.slane %v1348, %v1361
  %v1363 = vcombine.low %v1307, %v1323
  %v1364 = vcombine.high %v1307, %v1323
  %v1366 = vunpack.c.l.s4 1934713408
  %v1367 = vunpack.c.0.s8 %v1366
  %v1368 = vlaneseq
  %v1369 = vshrl.u32 %v1368, 7
  %v1370 = vsub.s32 %v1367, %v1369
  %v1371 = vrot.slane %v1363, %v1370
  %v1373 = vunpack.c.l.s4 1934713408
  %v1374 = vunpack.c.0.s8 %v1373
  %v1375 = vlaneseq
  %v1376 = vshrl.u32 %v1375, 7
  %v1377 = vsub.s32 %v1374, %v1376
  %v1378 = vrot.slane %v1364, %v1377
  %v1379 = vcombine.low %v1314, %v1330
  %v1380 = vcombine.high %v1314, %v1330
  %v1382 = vunpack.c.l.s4 1934713408
  %v1383 = vunpack.c.0.s8 %v1382
  %v1384 = vlaneseq
  %v1385 = vshrl.u32 %v1384, 7
  %v1386 = vsub.s32 %v1383, %v1385
  %v1387 = vrot.slane %v1379, %v1386
  %v1389 = vunpack.c.l.s4 1934713408
  %v1390 = vunpack.c.0.s8 %v1389
  %v1391 = vlaneseq
  %v1392 = vshrl.u32 %v1391, 7
  %v1393 = vsub.s32 %v1390, %v1392
  %v1394 = vrot.slane %v1380, %v1393
  %v1395 = vcombine.low %v1339, %v1355
  %v1396 = vcombine.high %v1339, %v1355
  %v1398 = vunpack.c.l.s4 1934713408
  %v1399 = vunpack.c.0.s8 %v1398
  %v1400 = vlaneseq
  %v1401 = vshrl.u32 %v1400, 7
  %v1402 = vsub.s32 %v1399, %v1401
  %v1403 = vrot.slane %v1395, %v1402
  %v1405 = vunpack.c.l.s4 1934713408
  %v1406 = vunpack.c.0.s8 %v1405
  %v1407 = vlaneseq
  %v1408 = vshrl.u32 %v1407, 7
  %v1409 = vsub.s32 %v1406, %v1408
  %v1410 = vrot.slane %v1396, %v1409
  %v1411 = vcombine.low %v1346, %v1362
  %v1412 = vcombine.high %v1346, %v1362
  %v1414 = vunpack.c.l.s4 1934713408
  %v1415 = vunpack.c.0.s8 %v1414
  %v1416 = vlaneseq
  %v1417 = vshrl.u32 %v1416, 7
  %v1418 = vsub.s32 %v1415, %v1417
  %v1419 = vrot.slane %v1411, %v1418
  %v1421 = vunpack.c.l.s4 1934713408
  %v1422 = vunpack.c.0.s8 %v1421
  %v1423 = vlaneseq
  %v1424 = vshrl.u32 %v1423, 7
  %v1425 = vsub.s32 %v1422, %v1424
  %v1426 = vrot.slane %v1412, %v1425
  %v1427 = vcombine.low %v1371, %v1403
  %v1428 = vcombine.high %v1371, %v1403
  %v1429 = vcombine.low %v1378, %v1410
  %v1430 = vcombine.high %v1378, %v1410
  %v1431 = vcombine.low %v1387, %v1419
  %v1432 = vcombine.high %v1387, %v1419
  %v1433 = vcombine.low %v1394, %v1426
  %v1434 = vcombine.high %v1394, %v1426
  %v1435 = vcombine.low %v1208, %v1230
  %v1436 = vcombine.high %v1208, %v1230
  %v1438 = vunpack.c.l.s4 1983009808
  %v1439 = vunpack.c.0.s8 %v1438
  %v1440 = vlaneseq
  %v1441 = vshrl.u32 %v1440, 7
  %v1442 = vsub.s32 %v1439, %v1441
  %v1443 = vrot.slane %v1435, %v1442
  %v1445 = vunpack.c.l.s4 1983009808
  %v1446 = vunpack.c.0.s8 %v1445
  %v1447 = vlaneseq
  %v1448 = vshrl.u32 %v1447, 7
  %v1449 = vsub.s32 %v1446, %v1448
  %v1450 = vrot.slane %v1436, %v1449
  %v1451 = vcombine.low %v1218, %v1242
  %v1452 = vcombine.high %v1218, %v1242
  %v1454 = vunpack.c.l.s4 1983009808
  %v1455 = vunpack.c.0.s8 %v1454
  %v1456 = vlaneseq
  %v1457 = vshrl.u32 %v1456, 7
  %v1458 = vsub.s32 %v1455, %v1457
  %v1459 = vrot.slane %v1451, %v1458
  %v1461 = vunpack.c.l.s4 1983009808
  %v1462 = vunpack.c.0.s8 %v1461
  %v1463 = vlaneseq
  %v1464 = vshrl.u32 %v1463, 7
  %v1465 = vsub.s32 %v1462, %v1464
  %v1466 = vrot.slane %v1452, %v1465
  %v1467 = vcombine.low %v1254, %v1278
  %v1468 = vcombine.high %v1254, %v1278
  %v1470 = vunpack.c.l.s4 1983009808
  %v1471 = vunpack.c.0.s8 %v1470
  %v1472 = vlaneseq
  %v1473 = vshrl.u32 %v1472, 7
  %v1474 = vsub.s32 %v1471, %v1473
  %v1475 = vrot.slane %v1467, %v1474
  %v1477 = vunpack.c.l.s4 1983009808
  %v1478 = vunpack.c.0.s8 %v1477
  %v1479 = vlaneseq
  %v1480 = vshrl.u32 %v1479, 7
  %v1481 = vsub.s32 %v1478, %v1480
  %v1482 = vrot.slane %v1468, %v1481
  %v1483 = vcombine.low %v1266, %v1290
  %v1484 = vcombine.high %v1266, %v1290
  %v1486 = vunpack.c.l.s4 1983009808
  %v1487 = vunpack.c.0.s8 %v1486
  %v1488 = vlaneseq
  %v1489 = vshrl.u32 %v1488, 7
  %v1490 = vsub.s32 %v1487, %v1489
  %v1491 = vrot.slane %v1483, %v1490
  %v1493 = vunpack.c.l.s4 1983009808
  %v1494 = vunpack.c.0.s8 %v1493
  %v1495 = vlaneseq
  %v1496 = vshrl.u32 %v1495, 7
  %v1497 = vsub.s32 %v1494, %v1496
  %v1498 = vrot.slane %v1484, %v1497
  %v1499 = vcombine.low %v1443, %v1459
  %v1500 = vcombine.high %v1443, %v1459
  %v1502 = vunpack.c.l.s4 1934713408
  %v1503 = vunpack.c.0.s8 %v1502
  %v1504 = vlaneseq
  %v1505 = vshrl.u32 %v1504, 7
  %v1506 = vsub.s32 %v1503, %v1505
  %v1507 = vrot.slane %v1499, %v1506
  %v1509 = vunpack.c.l.s4 1934713408
  %v1510 = vunpack.c.0.s8 %v1509
  %v1511 = vlaneseq
  %v1512 = vshrl.u32 %v1511, 7
  %v1513 = vsub.s32 %v1510, %v1512
  %v1514 = vrot.slane %v1500, %v1513
  %v1515 = vcombine.low %v1450, %v1466
  %v1516 = vcombine.high %v1450, %v1466
  %v1518 = vunpack.c.l.s4 1934713408
  %v1519 = vunpack.c.0.s8 %v1518
  %v1520 = vlaneseq
  %v1521 = vshrl.u32 %v1520, 7
  %v1522 = vsub.s32 %v1519, %v1521
  %v1523 = vrot.slane %v1515, %v1522
  %v1525 = vunpack.c.l.s4 1934713408
  %v1526 = vunpack.c.0.s8 %v1525
  %v1527 = vlaneseq
  %v1528 = vshrl.u32 %v1527, 7
  %v1529 = vsub.s32 %v1526, %v1528
  %v1530 = vrot.slane %v1516, %v1529
  %v1531 = vcombine.low %v1475, %v1491
  %v1532 = vcombine.high %v1475, %v1491
  %v1534 = vunpack.c.l.s4 1934713408
  %v1535 = vunpack.c.0.s8 %v1534
  %v1536 = vlaneseq
  %v1537 = vshrl.u32 %v1536, 7
  %v1538 = vsub.s32 %v1535, %v1537
  %v1539 = vrot.slane %v1531, %v1538
  %v1541 = vunpack.c.l.s4 1934713408
  %v1542 = vunpack.c.0.s8 %v1541
  %v1543 = vlaneseq
  %v1544 = vshrl.u32 %v1543, 7
  %v1545 = vsub.s32 %v1542, %v1544
  %v1546 = vrot.slane %v1532, %v1545
  %v1547 = vcombine.low %v1482, %v1498
  %v1548 = vcombine.high %v1482, %v1498
  %v1550 = vunpack.c.l.s4 1934713408
  %v1551 = vunpack.c.0.s8 %v1550
  %v1552 = vlaneseq
  %v1553 = vshrl.u32 %v1552, 7
  %v1554 = vsub.s32 %v1551, %v1553
  %v1555 = vrot.slane %v1547, %v1554
  %v1557 = vunpack.c.l.s4 1934713408
  %v1558 = vunpack.c.0.s8 %v1557
  %v1559 = vlaneseq
  %v1560 = vshrl.u32 %v1559, 7
  %v1561 = vsub.s32 %v1558, %v1560
  %v1562 = vrot.slane %v1548, %v1561
  %v1563 = vcombine.low %v1507, %v1539
  %v1564 = vcombine.high %v1507, %v1539
  %v1565 = vcombine.low %v1514, %v1546
  %v1566 = vcombine.high %v1514, %v1546
  %v1567 = vcombine.low %v1523, %v1555
  %v1568 = vcombine.high %v1523, %v1555
  %v1569 = vcombine.low %v1530, %v1562
  %v1570 = vcombine.high %v1530, %v1562
  %v1571 = vcombine.low %v1209, %v1232
  %v1572 = vcombine.high %v1209, %v1232
  %v1574 = vunpack.c.l.s4 1983009808
  %v1575 = vunpack.c.0.s8 %v1574
  %v1576 = vlaneseq
  %v1577 = vshrl.u32 %v1576, 7
  %v1578 = vsub.s32 %v1575, %v1577
  %v1579 = vrot.slane %v1571, %v1578
  %v1581 = vunpack.c.l.s4 1983009808
  %v1582 = vunpack.c.0.s8 %v1581
  %v1583 = vlaneseq
  %v1584 = vshrl.u32 %v1583, 7
  %v1585 = vsub.s32 %v1582, %v1584
  %v1586 = vrot.slane %v1572, %v1585
  %v1587 = vcombine.low %v1220, %v1244
  %v1588 = vcombine.high %v1220, %v1244
  %v1590 = vunpack.c.l.s4 1983009808
  %v1591 = vunpack.c.0.s8 %v1590
  %v1592 = vlaneseq
  %v1593 = vshrl.u32 %v1592, 7
  %v1594 = vsub.s32 %v1591, %v1593
  %v1595 = vrot.slane %v1587, %v1594
  %v1597 = vunpack.c.l.s4 1983009808
  %v1598 = vunpack.c.0.s8 %v1597
  %v1599 = vlaneseq
  %v1600 = vshrl.u32 %v1599, 7
  %v1601 = vsub.s32 %v1598, %v1600
  %v1602 = vrot.slane %v1588, %v1601
  %v1603 = vcombine.low %v1256, %v1280
  %v1604 = vcombine.high %v1256, %v1280
  %v1606 = vunpack.c.l.s4 1983009808
  %v1607 = vunpack.c.0.s8 %v1606
  %v1608 = vlaneseq
  %v1609 = vshrl.u32 %v1608, 7
  %v1610 = vsub.s32 %v1607, %v1609
  %v1611 = vrot.slane %v1603, %v1610
  %v1613 = vunpack.c.l.s4 1983009808
  %v1614 = vunpack.c.0.s8 %v1613
  %v1615 = vlaneseq
  %v1616 = vshrl.u32 %v1615, 7
  %v1617 = vsub.s32 %v1614, %v1616
  %v1618 = vrot.slane %v1604, %v1617
  %v1619 = vcombine.low %v1268, %v1292
  %v1620 = vcombine.high %v1268, %v1292
  %v1622 = vunpack.c.l.s4 1983009808
  %v1623 = vunpack.c.0.s8 %v1622
  %v1624 = vlaneseq
  %v1625 = vshrl.u32 %v1624, 7
  %v1626 = vsub.s32 %v1623, %v1625
  %v1627 = vrot.slane %v1619, %v1626
  %v1629 = vunpack.c.l.s4 1983009808
  %v1630 = vunpack.c.0.s8 %v1629
  %v1631 = vlaneseq
  %v1632 = vshrl.u32 %v1631, 7
  %v1633 = vsub.s32 %v1630, %v1632
  %v1634 = vrot.slane %v1620, %v1633
  %v1635 = vcombine.low %v1579, %v1595
  %v1636 = vcombine.high %v1579, %v1595
  %v1638 = vunpack.c.l.s4 1934713408
  %v1639 = vunpack.c.0.s8 %v1638
  %v1640 = vlaneseq
  %v1641 = vshrl.u32 %v1640, 7
  %v1642 = vsub.s32 %v1639, %v1641
  %v1643 = vrot.slane %v1635, %v1642
  %v1645 = vunpack.c.l.s4 1934713408
  %v1646 = vunpack.c.0.s8 %v1645
  %v1647 = vlaneseq
  %v1648 = vshrl.u32 %v1647, 7
  %v1649 = vsub.s32 %v1646, %v1648
  %v1650 = vrot.slane %v1636, %v1649
  %v1651 = vcombine.low %v1586, %v1602
  %v1652 = vcombine.high %v1586, %v1602
  %v1654 = vunpack.c.l.s4 1934713408
  %v1655 = vunpack.c.0.s8 %v1654
  %v1656 = vlaneseq
  %v1657 = vshrl.u32 %v1656, 7
  %v1658 = vsub.s32 %v1655, %v1657
  %v1659 = vrot.slane %v1651, %v1658
  %v1661 = vunpack.c.l.s4 1934713408
  %v1662 = vunpack.c.0.s8 %v1661
  %v1663 = vlaneseq
  %v1664 = vshrl.u32 %v1663, 7
  %v1665 = vsub.s32 %v1662, %v1664
  %v1666 = vrot.slane %v1652, %v1665
  %v1667 = vcombine.low %v1611, %v1627
  %v1668 = vcombine.high %v1611, %v1627
  %v1670 = vunpack.c.l.s4 1934713408
  %v1671 = vunpack.c.0.s8 %v1670
  %v1672 = vlaneseq
  %v1673 = vshrl.u32 %v1672, 7
  %v1674 = vsub.s32 %v1671, %v1673
  %v1675 = vrot.slane %v1667, %v1674
  %v1677 = vunpack.c.l.s4 1934713408
  %v1678 = vunpack.c.0.s8 %v1677
  %v1679 = vlaneseq
  %v1680 = vshrl.u32 %v1679, 7
  %v1681 = vsub.s32 %v1678, %v1680
  %v1682 = vrot.slane %v1668, %v1681
  %v1683 = vcombine.low %v1618, %v1634
  %v1684 = vcombine.high %v1618, %v1634
  %v1686 = vunpack.c.l.s4 1934713408
  %v1687 = vunpack.c.0.s8 %v1686
  %v1688 = vlaneseq
  %v1689 = vshrl.u32 %v1688, 7
  %v1690 = vsub.s32 %v1687, %v1689
  %v1691 = vrot.slane %v1683, %v1690
  %v1693 = vunpack.c.l.s4 1934713408
  %v1694 = vunpack.c.0.s8 %v1693
  %v1695 = vlaneseq
  %v1696 = vshrl.u32 %v1695, 7
  %v1697 = vsub.s32 %v1694, %v1696
  %v1698 = vrot.slane %v1684, %v1697
  %v1699 = vcombine.low %v1643, %v1675
  %v1700 = vcombine.high %v1643, %v1675
  %v1701 = vcombine.low %v1650, %v1682
  %v1702 = vcombine.high %v1650, %v1682
  %v1703 = vcombine.low %v1659, %v1691
  %v1704 = vcombine.high %v1659, %v1691
  %v1705 = vcombine.low %v1666, %v1698
  %v1706 = vcombine.high %v1666, %v1698
  %v1707 = vcombine.low %v1210, %v1234
  %v1708 = vcombine.high %v1210, %v1234
  %v1710 = vunpack.c.l.s4 1983009808
  %v1711 = vunpack.c.0.s8 %v1710
  %v1712 = vlaneseq
  %v1713 = vshrl.u32 %v1712, 7
  %v1714 = vsub.s32 %v1711, %v1713
  %v1715 = vrot.slane %v1707, %v1714
  %v1717 = vunpack.c.l.s4 1983009808
  %v1718 = vunpack.c.0.s8 %v1717
  %v1719 = vlaneseq
  %v1720 = vshrl.u32 %v1719, 7
  %v1721 = vsub.s32 %v1718, %v1720
  %v1722 = vrot.slane %v1708, %v1721
  %v1723 = vcombine.low %v1222, %v1246
  %v1724 = vcombine.high %v1222, %v1246
  %v1726 = vunpack.c.l.s4 1983009808
  %v1727 = vunpack.c.0.s8 %v1726
  %v1728 = vlaneseq
  %v1729 = vshrl.u32 %v1728, 7
  %v1730 = vsub.s32 %v1727, %v1729
  %v1731 = vrot.slane %v1723, %v1730
  %v1733 = vunpack.c.l.s4 1983009808
  %v1734 = vunpack.c.0.s8 %v1733
  %v1735 = vlaneseq
  %v1736 = vshrl.u32 %v1735, 7
  %v1737 = vsub.s32 %v1734, %v1736
  %v1738 = vrot.slane %v1724, %v1737
  %v1739 = vcombine.low %v1258, %v1282
  %v1740 = vcombine.high %v1258, %v1282
  %v1742 = vunpack.c.l.s4 1983009808
  %v1743 = vunpack.c.0.s8 %v1742
  %v1744 = vlaneseq
  %v1745 = vshrl.u32 %v1744, 7
  %v1746 = vsub.s32 %v1743, %v1745
  %v1747 = vrot.slane %v1739, %v1746
  %v1749 = vunpack.c.l.s4 1983009808
  %v1750 = vunpack.c.0.s8 %v1749
  %v1751 = vlaneseq
  %v1752 = vshrl.u32 %v1751, 7
  %v1753 = vsub.s32 %v1750, %v1752
  %v1754 = vrot.slane %v1740, %v1753
  %v1755 = vcombine.low %v1270, %v1294
  %v1756 = vcombine.high %v1270, %v1294
  %v1758 = vunpack.c.l.s4 1983009808
  %v1759 = vunpack.c.0.s8 %v1758
  %v1760 = vlaneseq
  %v1761 = vshrl.u32 %v1760, 7
  %v1762 = vsub.s32 %v1759, %v1761
  %v1763 = vrot.slane %v1755, %v1762
  %v1765 = vunpack.c.l.s4 1983009808
  %v1766 = vunpack.c.0.s8 %v1765
  %v1767 = vlaneseq
  %v1768 = vshrl.u32 %v1767, 7
  %v1769 = vsub.s32 %v1766, %v1768
  %v1770 = vrot.slane %v1756, %v1769
  %v1771 = vcombine.low %v1715, %v1731
  %v1772 = vcombine.high %v1715, %v1731
  %v1774 = vunpack.c.l.s4 1934713408
  %v1775 = vunpack.c.0.s8 %v1774
  %v1776 = vlaneseq
  %v1777 = vshrl.u32 %v1776, 7
  %v1778 = vsub.s32 %v1775, %v1777
  %v1779 = vrot.slane %v1771, %v1778
  %v1781 = vunpack.c.l.s4 1934713408
  %v1782 = vunpack.c.0.s8 %v1781
  %v1783 = vlaneseq
  %v1784 = vshrl.u32 %v1783, 7
  %v1785 = vsub.s32 %v1782, %v1784
  %v1786 = vrot.slane %v1772, %v1785
  %v1787 = vcombine.low %v1722, %v1738
  %v1788 = vcombine.high %v1722, %v1738
  %v1790 = vunpack.c.l.s4 1934713408
  %v1791 = vunpack.c.0.s8 %v1790
  %v1792 = vlaneseq
  %v1793 = vshrl.u32 %v1792, 7
  %v1794 = vsub.s32 %v1791, %v1793
  %v1795 = vrot.slane %v1787, %v1794
  %v1797 = vunpack.c.l.s4 1934713408
  %v1798 = vunpack.c.0.s8 %v1797
  %v1799 = vlaneseq
  %v1800 = vshrl.u32 %v1799, 7
  %v1801 = vsub.s32 %v1798, %v1800
  %v1802 = vrot.slane %v1788, %v1801
  %v1803 = vcombine.low %v1747, %v1763
  %v1804 = vcombine.high %v1747, %v1763
  %v1806 = vunpack.c.l.s4 1934713408
  %v1807 = vunpack.c.0.s8 %v1806
  %v1808 = vlaneseq
  %v1809 = vshrl.u32 %v1808, 7
  %v1810 = vsub.s32 %v1807, %v1809
  %v1811 = vrot.slane %v1803, %v1810
  %v1813 = vunpack.c.l.s4 1934713408
  %v1814 = vunpack.c.0.s8 %v1813
  %v1815 = vlaneseq
  %v1816 = vshrl.u32 %v1815, 7
  %v1817 = vsub.s32 %v1814, %v1816
  %v1818 = vrot.slane %v1804, %v1817
  %v1819 = vcombine.low %v1754, %v1770
  %v1820 = vcombine.high %v1754, %v1770
  %v1822 = vunpack.c.l.s4 1934713408
  %v1823 = vunpack.c.0.s8 %v1822
  %v1824 = vlaneseq
  %v1825 = vshrl.u32 %v1824, 7
  %v1826 = vsub.s32 %v1823, %v1825
  %v1827 = vrot.slane %v1819, %v1826
  %v1829 = vunpack.c.l.s4 1934713408
  %v1830 = vunpack.c.0.s8 %v1829
  %v1831 = vlaneseq
  %v1832 = vshrl.u32 %v1831, 7
  %v1833 = vsub.s32 %v1830, %v1832
  %v1834 = vrot.slane %v1820, %v1833
  %v1835 = vcombine.low %v1779, %v1811
  %v1836 = vcombine.high %v1779, %v1811
  %v1837 = vcombine.low %v1786, %v1818
  %v1838 = vcombine.high %v1786, %v1818
  %v1839 = vcombine.low %v1795, %v1827
  %v1840 = vcombine.high %v1795, %v1827
  %v1841 = vcombine.low %v1802, %v1834
  %v1842 = vcombine.high %v1802, %v1834
  %v1843 = vsel %vm781, %v1427, 0.0
  %1844 = vadd.xlane.f32.xlu0 %v1843
  %v1845 = vpop.xlane.xlu0 %1844
  %v1846 = vsel %vm781, %v1428, 0.0
  %1847 = vadd.xlane.f32.xlu0 %v1846
  %v1848 = vpop.xlane.xlu0 %1847
  %v1849 = vsel %vm781, %v1429, 0.0
  %1850 = vadd.xlane.f32.xlu0 %v1849
  %v1851 = vpop.xlane.xlu0 %1850
  %v1852 = vsel %vm781, %v1430, 0.0
  %1853 = vadd.xlane.f32.xlu0 %v1852
  %v1854 = vpop.xlane.xlu0 %1853
  %v1855 = vsel %vm781, %v1431, 0.0
  %1856 = vadd.xlane.f32.xlu0 %v1855
  %v1857 = vpop.xlane.xlu0 %1856
  %v1858 = vsel %vm781, %v1432, 0.0
  %1859 = vadd.xlane.f32.xlu0 %v1858
  %v1860 = vpop.xlane.xlu0 %1859
  %v1861 = vsel %vm781, %v1433, 0.0
  %1862 = vadd.xlane.f32.xlu0 %v1861
  %v1863 = vpop.xlane.xlu0 %1862
  %v1864 = vsel %vm781, %v1434, 0.0
  %1865 = vadd.xlane.f32.xlu0 %v1864
  %v1866 = vpop.xlane.xlu0 %1865
  %v1867 = vsel %vm781, %v1563, 0.0
  %1868 = vadd.xlane.f32.xlu0 %v1867
  %v1869 = vpop.xlane.xlu0 %1868
  %v1870 = vsel %vm781, %v1564, 0.0
  %1871 = vadd.xlane.f32.xlu0 %v1870
  %v1872 = vpop.xlane.xlu0 %1871
  %v1873 = vsel %vm781, %v1565, 0.0
  %1874 = vadd.xlane.f32.xlu0 %v1873
  %v1875 = vpop.xlane.xlu0 %1874
  %v1876 = vsel %vm781, %v1566, 0.0
  %1877 = vadd.xlane.f32.xlu0 %v1876
  %v1878 = vpop.xlane.xlu0 %1877
  %v1879 = vsel %vm781, %v1567, 0.0
  %1880 = vadd.xlane.f32.xlu0 %v1879
  %v1881 = vpop.xlane.xlu0 %1880
  %v1882 = vsel %vm781, %v1568, 0.0
  %1883 = vadd.xlane.f32.xlu0 %v1882
  %v1884 = vpop.xlane.xlu0 %1883
  %v1885 = vsel %vm781, %v1569, 0.0
  %1886 = vadd.xlane.f32.xlu0 %v1885
  %v1887 = vpop.xlane.xlu0 %1886
  %v1888 = vsel %vm781, %v1570, 0.0
  %1889 = vadd.xlane.f32.xlu0 %v1888
  %v1890 = vpop.xlane.xlu0 %1889
  %v1891 = vsel %vm781, %v1699, 0.0
  %1892 = vadd.xlane.f32.xlu0 %v1891
  %v1893 = vpop.xlane.xlu0 %1892
  %v1894 = vsel %vm781, %v1700, 0.0
  %1895 = vadd.xlane.f32.xlu0 %v1894
  %v1896 = vpop.xlane.xlu0 %1895
  %v1897 = vsel %vm781, %v1701, 0.0
  %1898 = vadd.xlane.f32.xlu0 %v1897
  %v1899 = vpop.xlane.xlu0 %1898
  %v1900 = vsel %vm781, %v1702, 0.0
  %1901 = vadd.xlane.f32.xlu0 %v1900
  %v1902 = vpop.xlane.xlu0 %1901
  %v1903 = vsel %vm781, %v1703, 0.0
  %1904 = vadd.xlane.f32.xlu0 %v1903
  %v1905 = vpop.xlane.xlu0 %1904
  %v1906 = vsel %vm781, %v1704, 0.0
  %1907 = vadd.xlane.f32.xlu0 %v1906
  %v1908 = vpop.xlane.xlu0 %1907
  %v1909 = vsel %vm781, %v1705, 0.0
  %1910 = vadd.xlane.f32.xlu0 %v1909
  %v1911 = vpop.xlane.xlu0 %1910
  %v1912 = vsel %vm781, %v1706, 0.0
  %1913 = vadd.xlane.f32.xlu0 %v1912
  %v1914 = vpop.xlane.xlu0 %1913
  %v1915 = vsel %vm781, %v1835, 0.0
  %1916 = vadd.xlane.f32.xlu0 %v1915
  %v1917 = vpop.xlane.xlu0 %1916
  %v1918 = vsel %vm781, %v1836, 0.0
  %1919 = vadd.xlane.f32.xlu0 %v1918
  %v1920 = vpop.xlane.xlu0 %1919
  %v1921 = vsel %vm781, %v1837, 0.0
  %1922 = vadd.xlane.f32.xlu0 %v1921
  %v1923 = vpop.xlane.xlu0 %1922
  %v1924 = vsel %vm781, %v1838, 0.0
  %1925 = vadd.xlane.f32.xlu0 %v1924
  %v1926 = vpop.xlane.xlu0 %1925
  %v1927 = vsel %vm781, %v1839, 0.0
  %1928 = vadd.xlane.f32.xlu0 %v1927
  %v1929 = vpop.xlane.xlu0 %1928
  %v1930 = vsel %vm781, %v1840, 0.0
  %1931 = vadd.xlane.f32.xlu0 %v1930
  %v1932 = vpop.xlane.xlu0 %1931
  %v1933 = vsel %vm781, %v1841, 0.0
  %1934 = vadd.xlane.f32.xlu0 %v1933
  %v1935 = vpop.xlane.xlu0 %1934
  %v1936 = vsel %vm781, %v1842, 0.0
  %1937 = vadd.xlane.f32.xlu0 %v1936
  %v1938 = vpop.xlane.xlu0 %1937
  %v1939 = vmul.f32 %v1845, %v878
  %v1940 = vmul.f32 %v1848, %v878
  %v1941 = vmul.f32 %v1851, %v878
  %v1942 = vmul.f32 %v1854, %v878
  %v1943 = vmul.f32 %v1857, %v878
  %v1944 = vmul.f32 %v1860, %v878
  %v1945 = vmul.f32 %v1863, %v878
  %v1946 = vmul.f32 %v1866, %v878
  %v1947 = vmul.f32 %v1869, %v878
  %v1948 = vmul.f32 %v1872, %v878
  %v1949 = vmul.f32 %v1875, %v878
  %v1950 = vmul.f32 %v1878, %v878
  %v1951 = vmul.f32 %v1881, %v878
  %v1952 = vmul.f32 %v1884, %v878
  %v1953 = vmul.f32 %v1887, %v878
  %v1954 = vmul.f32 %v1890, %v878
  %v1955 = vmul.f32 %v1893, %v878
  %v1956 = vmul.f32 %v1896, %v878
  %v1957 = vmul.f32 %v1899, %v878
  %v1958 = vmul.f32 %v1902, %v878
  %v1959 = vmul.f32 %v1905, %v878
  %v1960 = vmul.f32 %v1908, %v878
  %v1961 = vmul.f32 %v1911, %v878
  %v1962 = vmul.f32 %v1914, %v878
  %v1963 = vmul.f32 %v1917, %v878
  %v1964 = vmul.f32 %v1920, %v878
  %v1965 = vmul.f32 %v1923, %v878
  %v1966 = vmul.f32 %v1926, %v878
  %v1967 = vmul.f32 %v1929, %v878
  %v1968 = vmul.f32 %v1932, %v878
  %v1969 = vmul.f32 %v1935, %v878
  %v1970 = vmul.f32 %v1938, %v878
  %v2003 = vlaneseq
  %v2004 = vshrl.u32 %v2003, 7
  %v2005 = vsub.s32 %v944, %v2004
  %v2006 = vrot.slane %v1939, %v2005
  %v2007 = vlaneseq
  %v2008 = vshrl.u32 %v2007, 7
  %v2009 = vsub.s32 %v944, %v2008
  %v2010 = vrot.slane %v1940, %v2009
  %v2011 = vlaneseq
  %v2012 = vshrl.u32 %v2011, 7
  %v2013 = vsub.s32 %v944, %v2012
  %v2014 = vrot.slane %v1941, %v2013
  %v2015 = vlaneseq
  %v2016 = vshrl.u32 %v2015, 7
  %v2017 = vsub.s32 %v944, %v2016
  %v2018 = vrot.slane %v1942, %v2017
  %v2019 = vlaneseq
  %v2020 = vshrl.u32 %v2019, 7
  %v2021 = vsub.s32 %v944, %v2020
  %v2022 = vrot.slane %v1943, %v2021
  %v2023 = vlaneseq
  %v2024 = vshrl.u32 %v2023, 7
  %v2025 = vsub.s32 %v944, %v2024
  %v2026 = vrot.slane %v1944, %v2025
  %v2027 = vlaneseq
  %v2028 = vshrl.u32 %v2027, 7
  %v2029 = vsub.s32 %v944, %v2028
  %v2030 = vrot.slane %v1945, %v2029
  %v2031 = vlaneseq
  %v2032 = vshrl.u32 %v2031, 7
  %v2033 = vsub.s32 %v944, %v2032
  %v2034 = vrot.slane %v1946, %v2033
  %v2035 = vlaneseq
  %v2036 = vshrl.u32 %v2035, 7
  %v2037 = vsub.s32 %v944, %v2036
  %v2038 = vrot.slane %v1947, %v2037
  %v2039 = vlaneseq
  %v2040 = vshrl.u32 %v2039, 7
  %v2041 = vsub.s32 %v944, %v2040
  %v2042 = vrot.slane %v1948, %v2041
  %v2043 = vlaneseq
  %v2044 = vshrl.u32 %v2043, 7
  %v2045 = vsub.s32 %v944, %v2044
  %v2046 = vrot.slane %v1949, %v2045
  %v2047 = vlaneseq
  %v2048 = vshrl.u32 %v2047, 7
  %v2049 = vsub.s32 %v944, %v2048
  %v2050 = vrot.slane %v1950, %v2049
  %v2051 = vlaneseq
  %v2052 = vshrl.u32 %v2051, 7
  %v2053 = vsub.s32 %v944, %v2052
  %v2054 = vrot.slane %v1951, %v2053
  %v2055 = vlaneseq
  %v2056 = vshrl.u32 %v2055, 7
  %v2057 = vsub.s32 %v944, %v2056
  %v2058 = vrot.slane %v1952, %v2057
  %v2059 = vlaneseq
  %v2060 = vshrl.u32 %v2059, 7
  %v2061 = vsub.s32 %v944, %v2060
  %v2062 = vrot.slane %v1953, %v2061
  %v2063 = vlaneseq
  %v2064 = vshrl.u32 %v2063, 7
  %v2065 = vsub.s32 %v944, %v2064
  %v2066 = vrot.slane %v1954, %v2065
  %v2067 = vlaneseq
  %v2068 = vshrl.u32 %v2067, 7
  %v2069 = vsub.s32 %v944, %v2068
  %v2070 = vrot.slane %v1955, %v2069
  %v2071 = vlaneseq
  %v2072 = vshrl.u32 %v2071, 7
  %v2073 = vsub.s32 %v944, %v2072
  %v2074 = vrot.slane %v1956, %v2073
  %v2075 = vlaneseq
  %v2076 = vshrl.u32 %v2075, 7
  %v2077 = vsub.s32 %v944, %v2076
  %v2078 = vrot.slane %v1957, %v2077
  %v2079 = vlaneseq
  %v2080 = vshrl.u32 %v2079, 7
  %v2081 = vsub.s32 %v944, %v2080
  %v2082 = vrot.slane %v1958, %v2081
  %v2083 = vlaneseq
  %v2084 = vshrl.u32 %v2083, 7
  %v2085 = vsub.s32 %v944, %v2084
  %v2086 = vrot.slane %v1959, %v2085
  %v2087 = vlaneseq
  %v2088 = vshrl.u32 %v2087, 7
  %v2089 = vsub.s32 %v944, %v2088
  %v2090 = vrot.slane %v1960, %v2089
  %v2091 = vlaneseq
  %v2092 = vshrl.u32 %v2091, 7
  %v2093 = vsub.s32 %v944, %v2092
  %v2094 = vrot.slane %v1961, %v2093
  %v2095 = vlaneseq
  %v2096 = vshrl.u32 %v2095, 7
  %v2097 = vsub.s32 %v944, %v2096
  %v2098 = vrot.slane %v1962, %v2097
  %v2099 = vlaneseq
  %v2100 = vshrl.u32 %v2099, 7
  %v2101 = vsub.s32 %v944, %v2100
  %v2102 = vrot.slane %v1963, %v2101
  %v2103 = vlaneseq
  %v2104 = vshrl.u32 %v2103, 7
  %v2105 = vsub.s32 %v944, %v2104
  %v2106 = vrot.slane %v1964, %v2105
  %v2107 = vlaneseq
  %v2108 = vshrl.u32 %v2107, 7
  %v2109 = vsub.s32 %v944, %v2108
  %v2110 = vrot.slane %v1965, %v2109
  %v2111 = vlaneseq
  %v2112 = vshrl.u32 %v2111, 7
  %v2113 = vsub.s32 %v944, %v2112
  %v2114 = vrot.slane %v1966, %v2113
  %v2115 = vlaneseq
  %v2116 = vshrl.u32 %v2115, 7
  %v2117 = vsub.s32 %v944, %v2116
  %v2118 = vrot.slane %v1967, %v2117
  %v2119 = vlaneseq
  %v2120 = vshrl.u32 %v2119, 7
  %v2121 = vsub.s32 %v944, %v2120
  %v2122 = vrot.slane %v1968, %v2121
  %v2123 = vlaneseq
  %v2124 = vshrl.u32 %v2123, 7
  %v2125 = vsub.s32 %v944, %v2124
  %v2126 = vrot.slane %v1969, %v2125
  %v2127 = vlaneseq
  %v2128 = vshrl.u32 %v2127, 7
  %v2129 = vsub.s32 %v944, %v2128
  %v2130 = vrot.slane %v1970, %v2129
  %v2131 = vsel %vm1073, %v2010, %v2006
  %v2132 = vsel %vm1075, %v2014, %v2131
  %v2133 = vsel %vm1077, %v2018, %v2132
  %v2134 = vsel %vm1079, %v2022, %v2133
  %v2135 = vsel %vm1081, %v2026, %v2134
  %v2136 = vsel %vm1083, %v2030, %v2135
  %v2137 = vsel %vm1085, %v2034, %v2136
  %v2138 = vsel %vm1073, %v2042, %v2038
  %v2139 = vsel %vm1075, %v2046, %v2138
  %v2140 = vsel %vm1077, %v2050, %v2139
  %v2141 = vsel %vm1079, %v2054, %v2140
  %v2142 = vsel %vm1081, %v2058, %v2141
  %v2143 = vsel %vm1083, %v2062, %v2142
  %v2144 = vsel %vm1085, %v2066, %v2143
  %v2145 = vsel %vm1073, %v2074, %v2070
  %v2146 = vsel %vm1075, %v2078, %v2145
  %v2147 = vsel %vm1077, %v2082, %v2146
  %v2148 = vsel %vm1079, %v2086, %v2147
  %v2149 = vsel %vm1081, %v2090, %v2148
  %v2150 = vsel %vm1083, %v2094, %v2149
  %v2151 = vsel %vm1085, %v2098, %v2150
  %v2152 = vsel %vm1073, %v2106, %v2102
  %v2153 = vsel %vm1075, %v2110, %v2152
  %v2154 = vsel %vm1077, %v2114, %v2153
  %v2155 = vsel %vm1079, %v2118, %v2154
  %v2156 = vsel %vm1081, %v2122, %v2155
  %v2157 = vsel %vm1083, %v2126, %v2156
  %v2158 = vsel %vm1085, %v2130, %v2157
  %s2163 = scalar_lea.vmem %s3, 32
  %2164 = vst.msk [vmem:[%s2163] sm:$0xff] %vm1112, %v2137
  %2165 = vst.msk [vmem:[%s2163 + $0x8] sm:$0xff] %vm1112, %v2144
  %2166 = vst.msk [vmem:[%s2163 + $0x10] sm:$0xff] %vm1112, %v2151
  %2167 = vst.msk [vmem:[%s2163 + $0x18] sm:$0xff] %vm1112, %v2158
  // Predicated region
  $region14: #{tpu_custom_call.1} parent=0 // pred_check
    _
  $region15: #{tpu_custom_call.1} parent=0 // pred_check_branch
    %2169 = sbr.rel (0) target = $region17
  $region16: #{tpu_custom_call.1} parent=0 // pred_region
    _
  $region17: #{tpu_custom_call.1} parent=0 // pred_fallthru
    _
  // Predicated region
  $region18: #{tpu_custom_call.1} parent=0 // pred_check
    _
  $region19: #{tpu_custom_call.1} parent=0 // pred_check_branch
    %2171 = sbr.rel (0) target = $region21
  $region20: #{tpu_custom_call.1} parent=0 // pred_region
    _
  $region21: #{tpu_custom_call.1} parent=0 // pred_fallthru
    _

</llo_original>
